<compile_context>
chip_gen: v7x
topology: tpu7x:2x2x1
jax: 0.10.0
libtpu: 0.0.40
codegen_flags: <defaults>
</compile_context>

<pallas_src>
import functools

import jax
import jax.numpy as jnp
import numpy as np
from jax import lax
from jax.experimental import pallas as pl
from jax.experimental.pallas import tpu as pltpu

_LANE = 128


def _round_up(x, m):
    return (x + m - 1) // m * m


# ----------------------------------------------------------------------------
# Kernel 1: conv (single folded-K matmul per row tile) + per-channel batch stats
#           with in-kernel halo DMA (no im2col in HBM).
# ----------------------------------------------------------------------------
def _conv_stats_kernel(x_hbm, w_ref, y_ref, sum_ref, sq_ref, xbuf, sem):
    # x_hbm : (N, Hp, Wp, Cin_p)      padded NHWC input, stays in HBM (pl.ANY)
    # w_ref : (ks*ks*Cin_p, Cout_p)   folded conv weight, resident in VMEM
    # y_ref : (1, TH, Wo, Cout_p)     conv output row tile (lane-dense)
    # sum/sq: (1, 1, Cout_p)          per-image partial stats (accumulated over row tiles)
    # xbuf  : (2, TH+ks-1, Wp, Cin_p) double-buffered halo scratch
    # sem   : (2,) DMA semaphores
    th, wo, cout_p = y_ref.shape[1], y_ref.shape[2], y_ref.shape[3]
    halo, wp, cin_p = xbuf.shape[1], xbuf.shape[2], xbuf.shape[3]
    ks = halo - th + 1

    b = pl.program_id(0)
    i = pl.program_id(1)
    nt = pl.num_programs(1)
    slot = i & 1

    def halo_copy(tile_idx, slot_idx):
        return pltpu.make_async_copy(
            x_hbm.at[b, pl.ds(tile_idx * th, halo)],
            xbuf.at[slot_idx],
            sem.at[slot_idx],
        )

    # Prime the double buffer at the first row tile of every image.
    @pl.when(i == 0)
    def _():
        halo_copy(0, 0).start()

    # Wait for this tile's halo block, then prefetch the next one (overlaps compute).
    halo_copy(i, slot).wait()

    @pl.when(i + 1 < nt)
    def _():
        halo_copy(i + 1, 1 - slot).start()

    # Build the ks*ks-tap im2col slab in VMEM and fold the taps into the
    # contraction dimension: ONE MXU matmul with K = ks*ks*Cin_p.
    xb = xbuf[slot]                                     # (halo, Wp, Cin_p)
    taps = []
    for kh in range(ks):
        for kw in range(ks):
            taps.append(xb[kh:kh + th, kw:kw + wo, :])  # (TH, Wo, Cin_p)
    xcol = jnp.concatenate(taps, axis=-1).reshape(th * wo, ks * ks * cin_p)
    acc = jnp.dot(xcol, w_ref[...], preferred_element_type=jnp.float32)

    y_ref[0] = acc.reshape(th, wo, cout_p).astype(y_ref.dtype)

    # Per-image partial BN statistics, accumulated only across the inner
    # ("arbitrary") row-tile axis; batch axis stays "parallel".
    @pl.when(i == 0)
    def _():
        sum_ref[...] = jnp.zeros_like(sum_ref)
        sq_ref[...] = jnp.zeros_like(sq_ref)

    sum_ref[0] += jnp.sum(acc, axis=0, keepdims=True)
    sq_ref[0] += jnp.sum(acc * acc, axis=0, keepdims=True)


# ----------------------------------------------------------------------------
# Kernel 2: fused BatchNorm (folded scale/shift) + ReLU, elementwise, in place.
# ----------------------------------------------------------------------------
def _bn_relu_kernel(y_ref, scale_ref, shift_ref, o_ref):
    # y_ref/o_ref: (1, TH, Wo, Cout_p); scale/shift: (1, Cout_p)
    y = y_ref[0]
    scale = scale_ref[...].reshape(1, 1, -1)
    shift = shift_ref[...].reshape(1, 1, -1)
    o_ref[0] = jnp.maximum(y * scale + shift, 0.0).astype(o_ref.dtype)


# ----------------------------------------------------------------------------
# NHWC core (use this directly when stacking ConvBNReLU layers to avoid
# per-layer NCHW<->NHWC transposes).
# ----------------------------------------------------------------------------
def conv_bn_relu_nhwc(x_nhwc, w_oihw, gamma, beta, *, padding=1, eps=1e-5, row_tile=8):
    n, h, w, cin = x_nhwc.shape
    cout, _, ks, _ = w_oihw.shape
    # stride is fixed to 1 (module default).  TODO(synk): stride > 1 variants
    # (e.g. SpatialPath convs) are not implemented in this kernel.
    ho = h + 2 * padding - ks + 1
    wo = w + 2 * padding - ks + 1
    wp = w + 2 * padding

    cin_p = _round_up(cin, _LANE)     # lane-dense K
    cout_p = _round_up(cout, _LANE)   # lane-dense output stores

    th = row_tile if (row_tile <= ho and ho % row_tile == 0) else ho
    nt = ho // th
    halo = th + ks - 1

    # Layout glue (single pass by XLA): spatial + channel zero-padding and the
    # folded weight.  No im2col tensor is built in HBM.
    xp = jnp.pad(
        x_nhwc.astype(jnp.float32),
        ((0, 0), (padding, padding), (padding, padding), (0, cin_p - cin)),
    )
    wt = jnp.transpose(w_oihw.astype(jnp.float32), (2, 3, 1, 0))   # (kh, kw, cin, cout)
    wt = jnp.pad(wt, ((0, 0), (0, 0), (0, cin_p - cin), (0, cout_p - cout)))
    wflat = wt.reshape(ks * ks * cin_p, cout_p)

    conv, sums, sqs = pl.pallas_call(
        _conv_stats_kernel,
        out_shape=(
            jax.ShapeDtypeStruct((n, ho, wo, cout_p), jnp.float32),
            jax.ShapeDtypeStruct((n, 1, cout_p), jnp.float32),
            jax.ShapeDtypeStruct((n, 1, cout_p), jnp.float32),
        ),
        grid=(n, nt),
        in_specs=[
            pl.BlockSpec(memory_space=pl.ANY),                              # halo-DMA'd in kernel
            pl.BlockSpec((ks * ks * cin_p, cout_p), lambda b, i: (0, 0)),   # resident weights
        ],
        out_specs=(
            pl.BlockSpec((1, th, wo, cout_p), lambda b, i: (b, i, 0, 0)),
            pl.BlockSpec((1, 1, cout_p), lambda b, i: (b, 0, 0)),
            pl.BlockSpec((1, 1, cout_p), lambda b, i: (b, 0, 0)),
        ),
        scratch_shapes=[
            pltpu.VMEM((2, halo, wp, cin_p), jnp.float32),
            pltpu.SemaphoreType.DMA((2,)),
        ],
        compiler_params=pltpu.CompilerParams(
            dimension_semantics=("parallel", "arbitrary"),
        ),
    )(xp, wflat)

    # Train-mode BatchNorm: biased batch statistics over (N, H, W) per channel.
    # Padded channels are exactly zero (zero weights) -> zero mean/var, sliced off later.
    count = jnp.float32(n * ho * wo)
    mean = jnp.sum(sums, axis=0) / count                           # (1, Cout_p)
    var = jnp.maximum(jnp.sum(sqs, axis=0) / count - mean * mean, 0.0)
    gamma_p = jnp.pad(gamma.astype(jnp.float32), (0, cout_p - cout))
    beta_p = jnp.pad(beta.astype(jnp.float32), (0, cout_p - cout))
    scale = gamma_p[None, :] * lax.rsqrt(var + eps)
    shift = beta_p[None, :] - mean * scale
    # TODO(synk): running_mean / running_var buffer updates (training-side BN state)
    # are not modeled; only the forward output is reproduced.

    out = pl.pallas_call(
        _bn_relu_kernel,
        out_shape=jax.ShapeDtypeStruct((n, ho, wo, cout_p), jnp.float32),
        grid=(n, nt),
        in_specs=[
            pl.BlockSpec((1, th, wo, cout_p), lambda b, i: (b, i, 0, 0)),
            pl.BlockSpec((1, cout_p), lambda b, i: (0, 0)),
            pl.BlockSpec((1, cout_p), lambda b, i: (0, 0)),
        ],
        out_specs=pl.BlockSpec((1, th, wo, cout_p), lambda b, i: (b, i, 0, 0)),
        input_output_aliases={0: 0},   # elementwise -> safe to write in place
        compiler_params=pltpu.CompilerParams(
            dimension_semantics=("parallel", "parallel"),
        ),
    )(conv, scale, shift)

    return out[..., :cout]             # (N, Ho, Wo, Cout) NHWC


# ----------------------------------------------------------------------------
# PyTorch-facing NCHW wrapper (transpose only at the module boundary).
# ----------------------------------------------------------------------------
@functools.partial(jax.jit, static_argnames=("padding", "eps", "row_tile"))
def conv_bn_relu(x_nchw, w_oihw, gamma, beta, *, padding=1, eps=1e-5, row_tile=8):
    x_nhwc = jnp.transpose(x_nchw, (0, 2, 3, 1))
    out_nhwc = conv_bn_relu_nhwc(
        x_nhwc, w_oihw, gamma, beta, padding=padding, eps=eps, row_tile=row_tile
    )
    return jnp.transpose(out_nhwc, (0, 3, 1, 2))


# ----------------------------------------------------------------------------
# Pure-JAX reference (same semantics as the PyTorch ConvBNReLU in train mode)
# ----------------------------------------------------------------------------
def reference(x_nchw, w_oihw, gamma, beta, eps=1e-5):
    y = lax.conv_general_dilated(
        x_nchw, w_oihw, window_strides=(1, 1), padding=((1, 1), (1, 1)),
        dimension_numbers=("NCHW", "OIHW", "NCHW"),
        precision=lax.Precision.HIGHEST,
    )
    mean = y.mean(axis=(0, 2, 3), keepdims=True)
    var = y.var(axis=(0, 2, 3), keepdims=True)  # biased, like torch BN training
    yhat = (y - mean) / jnp.sqrt(var + eps)
    out = yhat * gamma[None, :, None, None] + beta[None, :, None, None]
    return jnp.maximum(out, 0.0)


if __name__ == "__main__":
    N, CIN, COUT, H, W, KS = 2, 4, 8, 16, 16, 3

    key = jax.random.PRNGKey(0)
    kx, kw = jax.random.split(key)

    x = jax.random.normal(kx, (N, CIN, H, W), dtype=jnp.float32)

    # nn.init.kaiming_normal_(weight, a=1): gain = sqrt(2/(1+a^2)) = 1,
    # fan_in = CIN*KS*KS -> std = 1/sqrt(CIN*KS*KS).
    w_std = 1.0 / np.sqrt(CIN * KS * KS)
    weight = jax.random.normal(kw, (COUT, CIN, KS, KS), dtype=jnp.float32) * w_std

    # BatchNorm2d default init: gamma = 1, beta = 0.
    gamma = jnp.ones((COUT,), dtype=jnp.float32)
    beta = jnp.zeros((COUT,), dtype=jnp.float32)

    out = jax.block_until_ready(conv_bn_relu(x, weight, gamma, beta))
    ref = jax.block_until_ready(reference(x, weight, gamma, beta))

    assert out.shape == (N, COUT, H, W), out.shape
    np.testing.assert_allclose(np.asarray(out), np.asarray(ref), atol=3e-4, rtol=3e-4)

    print("KERNEL_OK")
</pallas_src>

<mosaic_0001>
module attributes {stable_mosaic.version = 11 : i64} {
  func.func @_conv_stats_kernel(%arg0: i32, %arg1: i32, %arg2: memref<2x18x18x128xf32, #tpu.memory_space<any>>, %arg3: memref<1152x128xf32, #tpu.memory_space<vmem>>, %arg4: memref<1x8x16x128xf32, #tpu.memory_space<vmem>>, %arg5: memref<1x1x128xf32, #tpu.memory_space<vmem>>, %arg6: memref<1x1x128xf32, #tpu.memory_space<vmem>>, %arg7: memref<2x10x18x128xf32, #tpu.memory_space<vmem>>, %arg8: memref<2x!tpu.dma_semaphore, #tpu.memory_space<semaphore_mem>>) attributes {dimension_semantics = [#tpu.dimension_semantics<parallel>, #tpu.dimension_semantics<arbitrary>], iteration_bounds = array<i64: 2, 2>, scalar_prefetch = 0 : i64, scratch_operands = 2 : i64, tpu.core_type = #tpu.core_type<tc>, window_params = [{}, {pipeline_mode = #tpu.pipeline_mode<synchronous>, transform_indices = @transform_1, window_bounds = array<i64: 1152, 128>}, {transform_indices = @transform_2, window_bounds = array<i64: 1, 8, 16, 128>}, {transform_indices = @transform_3, window_bounds = array<i64: 1, 1, 128>}, {transform_indices = @transform_4, window_bounds = array<i64: 1, 1, 128>}]} {
    %c1_i32 = arith.constant 1 : i32
    %0 = arith.andi %arg1, %c1_i32 : i32
    %c0_i32 = arith.constant 0 : i32
    %1 = arith.cmpi eq, %arg1, %c0_i32 : i32
    %2 = arith.extui %1 : i1 to i32
    %c0_i32_0 = arith.constant 0 : i32
    %3 = arith.cmpi ne, %2, %c0_i32_0 : i32
    scf.if %3 {
      %c0_i32_32 = arith.constant 0 : i32
      %c0_i32_33 = arith.constant 0 : i32
      %c0_i32_34 = arith.constant 0 : i32
      %c0_i32_35 = arith.constant 0 : i32
      %c0_i32_36 = arith.constant 0 : i32
      %55 = tpu.memref_slice %arg2[%arg0, %c0_i32_34, %c0_i32_35, %c0_i32_36] : memref<2x18x18x128xf32, #tpu.memory_space<any>> -> memref<1x10x18x128xf32, #tpu.memory_space<any>>
      %56 = tpu.memref_squeeze %55 : memref<1x10x18x128xf32, #tpu.memory_space<any>> -> memref<10x18x128xf32, #tpu.memory_space<any>>
      %c0_i32_37 = arith.constant 0 : i32
      %c0_i32_38 = arith.constant 0 : i32
      %c0_i32_39 = arith.constant 0 : i32
      %57 = tpu.memref_slice %arg7[%c0_i32_32, %c0_i32_37, %c0_i32_38, %c0_i32_39] : memref<2x10x18x128xf32, #tpu.memory_space<vmem>> -> memref<1x10x18x128xf32, #tpu.memory_space<vmem>>
      %58 = tpu.memref_squeeze %57 : memref<1x10x18x128xf32, #tpu.memory_space<vmem>> -> memref<10x18x128xf32, #tpu.memory_space<vmem>>
      %59 = tpu.memref_slice %arg8[%c0_i32_33] : memref<2x!tpu.dma_semaphore, #tpu.memory_space<semaphore_mem>> -> memref<1x!tpu.dma_semaphore, #tpu.memory_space<semaphore_mem>>
      %60 = tpu.memref_squeeze %59 : memref<1x!tpu.dma_semaphore, #tpu.memory_space<semaphore_mem>> -> memref<!tpu.dma_semaphore, #tpu.memory_space<semaphore_mem>>
      tpu.enqueue_dma source(%56 : memref<10x18x128xf32, #tpu.memory_space<any>>) target(%58 : memref<10x18x128xf32, #tpu.memory_space<vmem>>) target_semaphore(%60 : memref<!tpu.dma_semaphore, #tpu.memory_space<semaphore_mem>>)
    } else {
    }
    %c8_i32 = arith.constant 8 : i32
    %4 = arith.muli %arg1, %c8_i32 : i32
    %c0_i32_1 = arith.constant 0 : i32
    %c0_i32_2 = arith.constant 0 : i32
    %5 = tpu.memref_slice %arg2[%arg0, %4, %c0_i32_1, %c0_i32_2] : memref<2x18x18x128xf32, #tpu.memory_space<any>> -> memref<1x10x18x128xf32, #tpu.memory_space<any>>
    %6 = tpu.memref_squeeze %5 : memref<1x10x18x128xf32, #tpu.memory_space<any>> -> memref<10x18x128xf32, #tpu.memory_space<any>>
    %c0_i32_3 = arith.constant 0 : i32
    %c0_i32_4 = arith.constant 0 : i32
    %c0_i32_5 = arith.constant 0 : i32
    %7 = tpu.memref_slice %arg7[%0, %c0_i32_3, %c0_i32_4, %c0_i32_5] : memref<2x10x18x128xf32, #tpu.memory_space<vmem>> -> memref<1x10x18x128xf32, #tpu.memory_space<vmem>>
    %8 = tpu.memref_squeeze %7 : memref<1x10x18x128xf32, #tpu.memory_space<vmem>> -> memref<10x18x128xf32, #tpu.memory_space<vmem>>
    %9 = tpu.memref_slice %arg8[%0] : memref<2x!tpu.dma_semaphore, #tpu.memory_space<semaphore_mem>> -> memref<1x!tpu.dma_semaphore, #tpu.memory_space<semaphore_mem>>
    %10 = tpu.memref_squeeze %9 : memref<1x!tpu.dma_semaphore, #tpu.memory_space<semaphore_mem>> -> memref<!tpu.dma_semaphore, #tpu.memory_space<semaphore_mem>>
    tpu.wait_dma2 semaphore(%10 : memref<!tpu.dma_semaphore, #tpu.memory_space<semaphore_mem>>) src(%6 : memref<10x18x128xf32, #tpu.memory_space<any>>) dst(%8 : memref<10x18x128xf32, #tpu.memory_space<vmem>>)
    %c1_i32_6 = arith.constant 1 : i32
    %11 = arith.addi %arg1, %c1_i32_6 : i32
    %c2_i32 = arith.constant 2 : i32
    %12 = arith.cmpi slt, %11, %c2_i32 : i32
    %13 = arith.extui %12 : i1 to i32
    %c0_i32_7 = arith.constant 0 : i32
    %14 = arith.cmpi ne, %13, %c0_i32_7 : i32
    scf.if %14 {
      %c1_i32_32 = arith.constant 1 : i32
      %55 = arith.addi %arg1, %c1_i32_32 : i32
      %c1_i32_33 = arith.constant 1 : i32
      %56 = arith.subi %c1_i32_33, %0 : i32
      %c8_i32_34 = arith.constant 8 : i32
      %57 = arith.muli %55, %c8_i32_34 : i32
      %c0_i32_35 = arith.constant 0 : i32
      %c0_i32_36 = arith.constant 0 : i32
      %58 = tpu.memref_slice %arg2[%arg0, %57, %c0_i32_35, %c0_i32_36] : memref<2x18x18x128xf32, #tpu.memory_space<any>> -> memref<1x10x18x128xf32, #tpu.memory_space<any>>
      %59 = tpu.memref_squeeze %58 : memref<1x10x18x128xf32, #tpu.memory_space<any>> -> memref<10x18x128xf32, #tpu.memory_space<any>>
      %c0_i32_37 = arith.constant 0 : i32
      %c0_i32_38 = arith.constant 0 : i32
      %c0_i32_39 = arith.constant 0 : i32
      %60 = tpu.memref_slice %arg7[%56, %c0_i32_37, %c0_i32_38, %c0_i32_39] : memref<2x10x18x128xf32, #tpu.memory_space<vmem>> -> memref<1x10x18x128xf32, #tpu.memory_space<vmem>>
      %61 = tpu.memref_squeeze %60 : memref<1x10x18x128xf32, #tpu.memory_space<vmem>> -> memref<10x18x128xf32, #tpu.memory_space<vmem>>
      %62 = tpu.memref_slice %arg8[%56] : memref<2x!tpu.dma_semaphore, #tpu.memory_space<semaphore_mem>> -> memref<1x!tpu.dma_semaphore, #tpu.memory_space<semaphore_mem>>
      %63 = tpu.memref_squeeze %62 : memref<1x!tpu.dma_semaphore, #tpu.memory_space<semaphore_mem>> -> memref<!tpu.dma_semaphore, #tpu.memory_space<semaphore_mem>>
      tpu.enqueue_dma source(%59 : memref<10x18x128xf32, #tpu.memory_space<any>>) target(%61 : memref<10x18x128xf32, #tpu.memory_space<vmem>>) target_semaphore(%63 : memref<!tpu.dma_semaphore, #tpu.memory_space<semaphore_mem>>)
    } else {
    }
    %15 = arith.index_cast %0 : i32 to index
    %c0 = arith.constant 0 : index
    %c0_8 = arith.constant 0 : index
    %c0_9 = arith.constant 0 : index
    %16 = vector.load %arg7[%15, %c0, %c0_8, %c0_9] : memref<2x10x18x128xf32, #tpu.memory_space<vmem>>, vector<1x10x18x128xf32>
    %17 = vector.shape_cast %16 : vector<1x10x18x128xf32> to vector<10x18x128xf32>
    %18 = vector.extract_strided_slice %17 {offsets = [0, 0, 0], sizes = [8, 16, 128], strides = [1, 1, 1]} : vector<10x18x128xf32> to vector<8x16x128xf32>
    %19 = vector.extract_strided_slice %17 {offsets = [0, 1, 0], sizes = [8, 16, 128], strides = [1, 1, 1]} : vector<10x18x128xf32> to vector<8x16x128xf32>
    %20 = vector.extract_strided_slice %17 {offsets = [0, 2, 0], sizes = [8, 16, 128], strides = [1, 1, 1]} : vector<10x18x128xf32> to vector<8x16x128xf32>
    %21 = vector.extract_strided_slice %17 {offsets = [1, 0, 0], sizes = [8, 16, 128], strides = [1, 1, 1]} : vector<10x18x128xf32> to vector<8x16x128xf32>
    %22 = vector.extract_strided_slice %17 {offsets = [1, 1, 0], sizes = [8, 16, 128], strides = [1, 1, 1]} : vector<10x18x128xf32> to vector<8x16x128xf32>
    %23 = vector.extract_strided_slice %17 {offsets = [1, 2, 0], sizes = [8, 16, 128], strides = [1, 1, 1]} : vector<10x18x128xf32> to vector<8x16x128xf32>
    %24 = vector.extract_strided_slice %17 {offsets = [2, 0, 0], sizes = [8, 16, 128], strides = [1, 1, 1]} : vector<10x18x128xf32> to vector<8x16x128xf32>
    %25 = vector.extract_strided_slice %17 {offsets = [2, 1, 0], sizes = [8, 16, 128], strides = [1, 1, 1]} : vector<10x18x128xf32> to vector<8x16x128xf32>
    %26 = vector.extract_strided_slice %17 {offsets = [2, 2, 0], sizes = [8, 16, 128], strides = [1, 1, 1]} : vector<10x18x128xf32> to vector<8x16x128xf32>
    %27 = tpu.concatenate %18, %19, %20, %21, %22, %23, %24, %25, %26 in 2 : vector<8x16x128xf32>, vector<8x16x128xf32>, vector<8x16x128xf32>, vector<8x16x128xf32>, vector<8x16x128xf32>, vector<8x16x128xf32>, vector<8x16x128xf32>, vector<8x16x128xf32>, vector<8x16x128xf32> -> vector<8x16x1152xf32>
    %28 = vector.shape_cast %27 : vector<8x16x1152xf32> to vector<128x1152xf32>
    %c0_10 = arith.constant 0 : index
    %c0_11 = arith.constant 0 : index
    %29 = vector.load %arg3[%c0_10, %c0_11] : memref<1152x128xf32, #tpu.memory_space<vmem>>, vector<1152x128xf32>
    %cst = arith.constant dense<0.000000e+00> : vector<128x128xf32>
    %30 = tpu.matmul %28, %29, %cst {dimension_numbers = #tpu.dot_dimension_numbers<[1], [0], [0], [1], [0, 0, 1, 1], [], []>} : vector<128x1152xf32>, vector<1152x128xf32>, vector<128x128xf32> -> vector<128x128xf32>
    %31 = vector.shape_cast %30 : vector<128x128xf32> to vector<8x16x128xf32>
    %c0_12 = arith.constant 0 : index
    %c0_13 = arith.constant 0 : index
    %c0_14 = arith.constant 0 : index
    %c0_15 = arith.constant 0 : index
    %32 = vector.load %arg4[%c0_12, %c0_13, %c0_14, %c0_15] : memref<1x8x16x128xf32, #tpu.memory_space<vmem>>, vector<1x8x16x128xf32>
    %33 = vector.shape_cast %32 : vector<1x8x16x128xf32> to vector<8x16x128xf32>
    %34 = vector.shape_cast %31 : vector<8x16x128xf32> to vector<1x8x16x128xf32>
    tpu.vector_store %arg4[%c0_12, %c0_13, %c0_14, %c0_15], %34 {strides = array<i32>} : memref<1x8x16x128xf32, #tpu.memory_space<vmem>>, vector<1x8x16x128xf32>,
    %c0_i32_16 = arith.constant 0 : i32
    %35 = arith.cmpi eq, %arg1, %c0_i32_16 : i32
    %36 = arith.extui %35 : i1 to i32
    %c0_i32_17 = arith.constant 0 : i32
    %37 = arith.cmpi ne, %36, %c0_i32_17 : i32
    scf.if %37 {
      %cst_32 = arith.constant 0.000000e+00 : f32
      %55 = vector.broadcast %cst_32 : f32 to vector<1x1x128xf32>
      %c0_33 = arith.constant 0 : index
      %c0_34 = arith.constant 0 : index
      %c0_35 = arith.constant 0 : index
      %56 = vector.load %arg5[%c0_33, %c0_34, %c0_35] : memref<1x1x128xf32, #tpu.memory_space<vmem>>, vector<1x1x128xf32>
      tpu.vector_store %arg5[%c0_33, %c0_34, %c0_35], %55 {strides = array<i32>} : memref<1x1x128xf32, #tpu.memory_space<vmem>>, vector<1x1x128xf32>,
      %cst_36 = arith.constant 0.000000e+00 : f32
      %57 = vector.broadcast %cst_36 : f32 to vector<1x1x128xf32>
      %c0_37 = arith.constant 0 : index
      %c0_38 = arith.constant 0 : index
      %c0_39 = arith.constant 0 : index
      %58 = vector.load %arg6[%c0_37, %c0_38, %c0_39] : memref<1x1x128xf32, #tpu.memory_space<vmem>>, vector<1x1x128xf32>
      tpu.vector_store %arg6[%c0_37, %c0_38, %c0_39], %57 {strides = array<i32>} : memref<1x1x128xf32, #tpu.memory_space<vmem>>, vector<1x1x128xf32>,
    } else {
    }
    %c0_18 = arith.constant 0 : index
    %c0_19 = arith.constant 0 : index
    %c0_20 = arith.constant 0 : index
    %38 = vector.load %arg5[%c0_18, %c0_19, %c0_20] : memref<1x1x128xf32, #tpu.memory_space<vmem>>, vector<1x1x128xf32>
    %39 = vector.shape_cast %38 : vector<1x1x128xf32> to vector<1x128xf32>
    %cst_21 = arith.constant dense<0.000000e+00> : vector<128xf32>
    %40 = vector.multi_reduction <add>, %30, %cst_21 [0] : vector<128x128xf32> to vector<128xf32>
    %41 = vector.shape_cast %40 : vector<128xf32> to vector<1x128xf32>
    %42 = arith.addf %39, %41 : vector<1x128xf32>
    %c0_22 = arith.constant 0 : index
    %c0_23 = arith.constant 0 : index
    %c0_24 = arith.constant 0 : index
    %43 = vector.load %arg5[%c0_22, %c0_23, %c0_24] : memref<1x1x128xf32, #tpu.memory_space<vmem>>, vector<1x1x128xf32>
    %44 = vector.shape_cast %43 : vector<1x1x128xf32> to vector<1x128xf32>
    %45 = vector.shape_cast %42 : vector<1x128xf32> to vector<1x1x128xf32>
    tpu.vector_store %arg5[%c0_22, %c0_23, %c0_24], %45 {strides = array<i32>} : memref<1x1x128xf32, #tpu.memory_space<vmem>>, vector<1x1x128xf32>,
    %c0_25 = arith.constant 0 : index
    %c0_26 = arith.constant 0 : index
    %c0_27 = arith.constant 0 : index
    %46 = vector.load %arg6[%c0_25, %c0_26, %c0_27] : memref<1x1x128xf32, #tpu.memory_space<vmem>>, vector<1x1x128xf32>
    %47 = vector.shape_cast %46 : vector<1x1x128xf32> to vector<1x128xf32>
    %48 = arith.mulf %30, %30 : vector<128x128xf32>
    %cst_28 = arith.constant dense<0.000000e+00> : vector<128xf32>
    %49 = vector.multi_reduction <add>, %48, %cst_28 [0] : vector<128x128xf32> to vector<128xf32>
    %50 = vector.shape_cast %49 : vector<128xf32> to vector<1x128xf32>
    %51 = arith.addf %47, %50 : vector<1x128xf32>
    %c0_29 = arith.constant 0 : index
    %c0_30 = arith.constant 0 : index
    %c0_31 = arith.constant 0 : index
    %52 = vector.load %arg6[%c0_29, %c0_30, %c0_31] : memref<1x1x128xf32, #tpu.memory_space<vmem>>, vector<1x1x128xf32>
    %53 = vector.shape_cast %52 : vector<1x1x128xf32> to vector<1x128xf32>
    %54 = vector.shape_cast %51 : vector<1x128xf32> to vector<1x1x128xf32>
    tpu.vector_store %arg6[%c0_29, %c0_30, %c0_31], %54 {strides = array<i32>} : memref<1x1x128xf32, #tpu.memory_space<vmem>>, vector<1x1x128xf32>,
    return
  }
  func.func @transform_1(%arg0: i32, %arg1: i32) -> (i32, i32) {
    %c0_i32 = arith.constant 0 : i32
    %c0_i32_0 = arith.constant 0 : i32
    %c0_i32_1 = arith.constant 0 : i32
    return %c0_i32, %c0_i32_0 : i32, i32
  }
  func.func @transform_2(%arg0: i32, %arg1: i32) -> (i32, i32, i32, i32) {
    %c0_i32 = arith.constant 0 : i32
    %c0_i32_0 = arith.constant 0 : i32
    %c0_i32_1 = arith.constant 0 : i32
    return %arg0, %arg1, %c0_i32, %c0_i32_0 : i32, i32, i32, i32
  }
  func.func @transform_3(%arg0: i32, %arg1: i32) -> (i32, i32, i32) {
    %c0_i32 = arith.constant 0 : i32
    %c0_i32_0 = arith.constant 0 : i32
    %c0_i32_1 = arith.constant 0 : i32
    return %arg0, %c0_i32, %c0_i32_0 : i32, i32, i32
  }
  func.func @transform_4(%arg0: i32, %arg1: i32) -> (i32, i32, i32) {
    %c0_i32 = arith.constant 0 : i32
    %c0_i32_0 = arith.constant 0 : i32
    %c0_i32_1 = arith.constant 0 : i32
    return %arg0, %c0_i32, %c0_i32_0 : i32, i32, i32
  }
}

module attributes {stable_mosaic.version = 11 : i64} {
  func.func @_bn_relu_kernel(%arg0: i32, %arg1: i32, %arg2: memref<1x8x16x128xf32, #tpu.memory_space<vmem>>, %arg3: memref<1x128xf32, #tpu.memory_space<vmem>>, %arg4: memref<1x128xf32, #tpu.memory_space<vmem>>, %arg5: memref<1x8x16x128xf32, #tpu.memory_space<vmem>>) attributes {dimension_semantics = [#tpu.dimension_semantics<parallel>, #tpu.dimension_semantics<parallel>], iteration_bounds = array<i64: 2, 2>, scalar_prefetch = 0 : i64, scratch_operands = 0 : i64, tpu.core_type = #tpu.core_type<tc>, window_params = [{transform_indices = @transform_0, window_bounds = array<i64: 1, 8, 16, 128>}, {pipeline_mode = #tpu.pipeline_mode<synchronous>, transform_indices = @transform_1, window_bounds = array<i64: 1, 128>}, {pipeline_mode = #tpu.pipeline_mode<synchronous>, transform_indices = @transform_2, window_bounds = array<i64: 1, 128>}, {transform_indices = @transform_3, window_bounds = array<i64: 1, 8, 16, 128>}]} {
    %c0 = arith.constant 0 : index
    %c0_0 = arith.constant 0 : index
    %c0_1 = arith.constant 0 : index
    %c0_2 = arith.constant 0 : index
    %0 = vector.load %arg2[%c0, %c0_0, %c0_1, %c0_2] : memref<1x8x16x128xf32, #tpu.memory_space<vmem>>, vector<1x8x16x128xf32>
    %1 = vector.shape_cast %0 : vector<1x8x16x128xf32> to vector<8x16x128xf32>
    %c0_3 = arith.constant 0 : index
    %c0_4 = arith.constant 0 : index
    %2 = vector.load %arg3[%c0_3, %c0_4] : memref<1x128xf32, #tpu.memory_space<vmem>>, vector<1x128xf32>
    %3 = vector.shape_cast %2 : vector<1x128xf32> to vector<1x1x128xf32>
    %c0_5 = arith.constant 0 : index
    %c0_6 = arith.constant 0 : index
    %4 = vector.load %arg4[%c0_5, %c0_6] : memref<1x128xf32, #tpu.memory_space<vmem>>, vector<1x128xf32>
    %5 = vector.shape_cast %4 : vector<1x128xf32> to vector<1x1x128xf32>
    %6 = vector.broadcast %3 : vector<1x1x128xf32> to vector<8x16x128xf32>
    %7 = arith.mulf %1, %6 : vector<8x16x128xf32>
    %8 = vector.broadcast %5 : vector<1x1x128xf32> to vector<8x16x128xf32>
    %9 = arith.addf %7, %8 : vector<8x16x128xf32>
    %cst = arith.constant 0.000000e+00 : f32
    %10 = vector.broadcast %cst : f32 to vector<8x16x128xf32>
    %11 = arith.maximumf %9, %10 : vector<8x16x128xf32>
    %c0_7 = arith.constant 0 : index
    %c0_8 = arith.constant 0 : index
    %c0_9 = arith.constant 0 : index
    %c0_10 = arith.constant 0 : index
    %12 = vector.load %arg5[%c0_7, %c0_8, %c0_9, %c0_10] : memref<1x8x16x128xf32, #tpu.memory_space<vmem>>, vector<1x8x16x128xf32>
    %13 = vector.shape_cast %12 : vector<1x8x16x128xf32> to vector<8x16x128xf32>
    %14 = vector.shape_cast %11 : vector<8x16x128xf32> to vector<1x8x16x128xf32>
    tpu.vector_store %arg5[%c0_7, %c0_8, %c0_9, %c0_10], %14 {strides = array<i32>} : memref<1x8x16x128xf32, #tpu.memory_space<vmem>>, vector<1x8x16x128xf32>,
    return
  }
  func.func @transform_0(%arg0: i32, %arg1: i32) -> (i32, i32, i32, i32) {
    %c0_i32 = arith.constant 0 : i32
    %c0_i32_0 = arith.constant 0 : i32
    %c0_i32_1 = arith.constant 0 : i32
    return %arg0, %arg1, %c0_i32, %c0_i32_0 : i32, i32, i32, i32
  }
  func.func @transform_1(%arg0: i32, %arg1: i32) -> (i32, i32) {
    %c0_i32 = arith.constant 0 : i32
    %c0_i32_0 = arith.constant 0 : i32
    %c0_i32_1 = arith.constant 0 : i32
    return %c0_i32, %c0_i32_0 : i32, i32
  }
  func.func @transform_2(%arg0: i32, %arg1: i32) -> (i32, i32) {
    %c0_i32 = arith.constant 0 : i32
    %c0_i32_0 = arith.constant 0 : i32
    %c0_i32_1 = arith.constant 0 : i32
    return %c0_i32, %c0_i32_0 : i32, i32
  }
  func.func @transform_3(%arg0: i32, %arg1: i32) -> (i32, i32, i32, i32) {
    %c0_i32 = arith.constant 0 : i32
    %c0_i32_0 = arith.constant 0 : i32
    %c0_i32_1 = arith.constant 0 : i32
    return %arg0, %arg1, %c0_i32, %c0_i32_0 : i32, i32, i32, i32
  }
}

</mosaic_0001>

<llo_original>
// kernel: conv_bn_relu.3
$region0: #{conv_bn_relu.3}
  #allocation0 [shape = 'u32[]', space=smem, size = 0x4, offset = 0x4, fixed_abs, tag = 'smem constant byte address 0x4 - core index']
  #allocation1 [shape = 'u32[144,128]{1,0:T(1,128)}', space=vmem, size = 0x12000, scoped, tag = 'internal scratch']
  %s0 = inlined_call_operand.vmem [shape: f32[2,16,16,128], index: 0, kind: input, shape index: {}, may-alias: {0,3}]
  %s1 = inlined_call_operand.vmem [shape: f32[1,128], index: 1, kind: input, shape index: {}]
  %s2 = inlined_call_operand.vmem [shape: f32[1,128], index: 2, kind: input, shape index: {}]
  %s3 = inlined_call_operand.vmem [shape: f32[2,16,16,128], index: 3, kind: output, shape index: {}, may-alias: {0,3}]
  %s4 = sld [smem:[#allocation0]]
  $region45: #{conv_bn_relu.3} parent=0
    _
  %s6 = ssub.s32 1, %s4
  %s7 = scalar_select 0, %s6, %s4
  loop: start=0, step=1, limit=6
  $region2: #{conv_bn_relu.3} parent=0 // loop_pre_header
    _
  $region3: #{conv_bn_relu.3} parent=0 // loop_header
    %s9 = sphi 0, %s13
    %p10 = scmp.ge.s32.totalorder %s9, 6
    %s16 = sphi 0, %s28
    %s17 = sphi 0, %s24
    %s18 = sphi 0, %s16
    %s19 = sphi 0, %s17
    %s20 = sphi 0, %s18
    %s21 = sphi 0, %s19
    %s33 = sphi 0, %s35
    %s36 = sphi 0, %s33
    %s37 = sphi 0, %s36
    %s53 = sphi 0, %s37
    %s57 = sphi 0, %s57
    %s59 = sphi 0, %s57
    %s60 = sphi 0, %s59
    %s74 = sphi 0, %s60
    %s78 = sphi 0, %s78
    %s80 = sphi 0, %s78
    %s81 = sphi 0, %s80
    %s95 = sphi 0, %s81
    %s103 = sphi 0, %s105
    %s106 = sphi 0, %s103
    %s107 = sphi 0, %s106
    %s123 = sphi 0, %s107
  $region4: #{conv_bn_relu.3} parent=0 // loop_header_branch
    %12 = sbr.rel (%p10) target = $region8
  $region5: #{conv_bn_relu.3} parent=0 // loop_body
    %s14 = ssub.s32 %s9, 1
    %s15 = ssub.s32 %s9, 2
    %s22 = sadd.s32 1, %s17
    %p23 = scmp.ge.s32.totalorder %s22, 2
    %s24 = scalar_select %p23, 0, %s22
    %s25 = sadd.s32 1, %s16
    %s26 = scalar_select %p23, %s25, %s16
    %p27 = scmp.ge.s32.totalorder %s26, 2
    %s28 = scalar_select %p27, 0, %s26
    %s29 = ssub.s32 %s16, %s28
    %s30 = ssub.s32 %s17, %s24
    %s31 = sor.u32 %s29, %s30
    %p32 = scmp.eq.s32.totalorder %s31, 0
    %s34 = sadd.s32 %s33, 1
    %s35 = scalar_select %p32, %s33, %s34
    %p38 = pneg %p32
    %p39 = scmp.eq.s32.totalorder %s9, 3
    %p40 = por %p38, %p39
    %p41 = scmp.ne.s32.totalorder %s33, %s36
    %p42 = scmp.eq.s32.totalorder %s9, 0
    %p43 = por %p41, %p42
    %p44 = scmp.ne.s32.totalorder %s33, %s36
    %p45 = scmp.eq.s32.totalorder %s14, 3
    %p46 = por %p44, %p45
    %p47 = scmp.ne.s32.totalorder %s36, %s37
    %p48 = scmp.eq.s32.totalorder %s14, 0
    %p49 = por %p47, %p48
    %p50 = scmp.ne.s32.totalorder %s36, %s37
    %p51 = scmp.eq.s32.totalorder %s15, 3
    %p52 = por %p50, %p51
    %p54 = scmp.ne.s32.totalorder %s37, %s53
    %p55 = scmp.eq.s32.totalorder %s15, 0
    %p56 = por %p54, %p55
    %s58 = sadd.s32 %s57, 1
    %p61 = scmp.eq.s32.totalorder %s9, 3
    %p62 = scmp.ne.s32.totalorder %s57, %s59
    %p63 = scmp.eq.s32.totalorder %s9, 0
    %p64 = por %p62, %p63
    %p65 = scmp.ne.s32.totalorder %s57, %s59
    %p66 = scmp.eq.s32.totalorder %s14, 3
    %p67 = por %p65, %p66
    %p68 = scmp.ne.s32.totalorder %s59, %s60
    %p69 = scmp.eq.s32.totalorder %s14, 0
    %p70 = por %p68, %p69
    %p71 = scmp.ne.s32.totalorder %s59, %s60
    %p72 = scmp.eq.s32.totalorder %s15, 3
    %p73 = por %p71, %p72
    %p75 = scmp.ne.s32.totalorder %s60, %s74
    %p76 = scmp.eq.s32.totalorder %s15, 0
    %p77 = por %p75, %p76
    %s79 = sadd.s32 %s78, 1
    %p82 = scmp.eq.s32.totalorder %s9, 3
    %p83 = scmp.ne.s32.totalorder %s78, %s80
    %p84 = scmp.eq.s32.totalorder %s9, 0
    %p85 = por %p83, %p84
    %p86 = scmp.ne.s32.totalorder %s78, %s80
    %p87 = scmp.eq.s32.totalorder %s14, 3
    %p88 = por %p86, %p87
    %p89 = scmp.ne.s32.totalorder %s80, %s81
    %p90 = scmp.eq.s32.totalorder %s14, 0
    %p91 = por %p89, %p90
    %p92 = scmp.ne.s32.totalorder %s80, %s81
    %p93 = scmp.eq.s32.totalorder %s15, 3
    %p94 = por %p92, %p93
    %p96 = scmp.ne.s32.totalorder %s81, %s95
    %p97 = scmp.eq.s32.totalorder %s15, 0
    %p98 = por %p96, %p97
    %s99 = ssub.s32 %s16, %s28
    %s100 = ssub.s32 %s17, %s24
    %s101 = sor.u32 %s99, %s100
    %p102 = scmp.eq.s32.totalorder %s101, 0
    %s104 = sadd.s32 %s103, 1
    %s105 = scalar_select %p102, %s103, %s104
    %p108 = pneg %p102
    %p109 = scmp.eq.s32.totalorder %s9, 3
    %p110 = por %p108, %p109
    %p111 = scmp.ne.s32.totalorder %s103, %s106
    %p112 = scmp.eq.s32.totalorder %s9, 0
    %p113 = por %p111, %p112
    %p114 = scmp.ne.s32.totalorder %s103, %s106
    %p115 = scmp.eq.s32.totalorder %s14, 3
    %p116 = por %p114, %p115
    %p117 = scmp.ne.s32.totalorder %s106, %s107
    %p118 = scmp.eq.s32.totalorder %s14, 0
    %p119 = por %p117, %p118
    %p120 = scmp.ne.s32.totalorder %s106, %s107
    %p121 = scmp.eq.s32.totalorder %s15, 3
    %p122 = por %p120, %p121
    %p124 = scmp.ne.s32.totalorder %s107, %s123
    %p125 = scmp.eq.s32.totalorder %s15, 0
    %p126 = por %p124, %p125
    %p127 = scmp.le.s32.totalorder 1, %s9
    %p128 = scmp.lt.s32.totalorder %s9, 5
    %p129 = pnand %p127, %p128
    %p130 = pneg %p129
    // Predicated region
    $region9: #{conv_bn_relu.3} parent=5 // pred_check
      _
    $region10: #{conv_bn_relu.3} parent=5 // pred_check_branch
      %132 = sbr.rel (%p129) target = $region12
    $region11: #{conv_bn_relu.3} parent=5 // pred_region
      %s133 = ssub.s32 %s9, 1
      // Predicated region
      $region13: #{conv_bn_relu.3} parent=11 // pred_check
        %p134 = pneg %p70
      $region14: #{conv_bn_relu.3} parent=11 // pred_check_branch
        %136 = sbr.rel (%p134) target = $region16
      $region15: #{conv_bn_relu.3} parent=11 // pred_region
        _
      $region16: #{conv_bn_relu.3} parent=11 // pred_fallthru
        _
      // Predicated region
      $region17: #{conv_bn_relu.3} parent=11 // pred_check
        %p137 = pneg %p91
      $region18: #{conv_bn_relu.3} parent=11 // pred_check_branch
        %139 = sbr.rel (%p137) target = $region20
      $region19: #{conv_bn_relu.3} parent=11 // pred_region
        _
      $region20: #{conv_bn_relu.3} parent=11 // pred_fallthru
        _
    $region12: #{conv_bn_relu.3} parent=5 // pred_fallthru
      _
    %p140 = scmp.lt.s32.totalorder %s9, 4
    // Predicated region
    $region21: #{conv_bn_relu.3} parent=5 // pred_check
      %p141 = pneg %p140
    $region22: #{conv_bn_relu.3} parent=5 // pred_check_branch
      %143 = sbr.rel (%p141) target = $region24
    $region23: #{conv_bn_relu.3} parent=5 // pred_region
      // Predicated region
      $region25: #{conv_bn_relu.3} parent=23 // pred_check
        %p144 = pneg %p43
      $region26: #{conv_bn_relu.3} parent=23 // pred_check_branch
        %146 = sbr.rel (%p144) target = $region28
      $region27: #{conv_bn_relu.3} parent=23 // pred_region
        %s147 = smul.u32 8, %s17
        %p148 = scmp.lt.s32.totalorder %s16, 1
        %s149 = scalar_select %p148, %s16, 1
        %p150 = scmp.lt.s32.totalorder %s147, 15
        %s151 = scalar_select %p150, %s147, 15
        %s152 = smul.addr %s151, 2
        %s153 = smul.addr %s149, 32
        %s154 = sadd.s32 %s152, %s153
        %s155 = smul.addr %s154, 8
        %s156 = scalar_lea.vmem %s0, %s155
        %s157 = smul.u32 8, %s17
      $region28: #{conv_bn_relu.3} parent=23 // pred_fallthru
        _
    $region24: #{conv_bn_relu.3} parent=5 // pred_fallthru
      _
    %p158 = scmp.le.s32.totalorder 1, %s9
    %p159 = scmp.lt.s32.totalorder %s9, 5
    %p160 = pnand %p158, %p159
    %p161 = pneg %p160
    // Predicated region
    $region29: #{conv_bn_relu.3} parent=5 // pred_check
      _
    $region30: #{conv_bn_relu.3} parent=5 // pred_check_branch
      %163 = sbr.rel (%p160) target = $region32
    $region31: #{conv_bn_relu.3} parent=5 // pred_region
      %s164 = ssub.s32 %s9, 1
      %s165 = smul.u32 8, %s19
      %p166 = scmp.lt.s32.totalorder %s18, 1
      %s167 = scalar_select %p166, %s18, 1
      %p168 = scmp.lt.s32.totalorder %s165, 15
      %s169 = scalar_select %p168, %s165, 15
      %s170 = smul.addr %s169, 2
      %s171 = smul.addr %s167, 32
      %s172 = sadd.s32 %s170, %s171
      %s173 = smul.addr %s172, 8
      %s174 = scalar_lea.vmem %s0, %s173
      %p175 = pneg %p49
      %p176 = pneg %p46
      %p177 = pneg %p70
      %p178 = pneg %p67
      %p179 = pneg %p91
      %p180 = pneg %p88
      %p181 = pneg %p119
      %p182 = pneg %p116
      %s183 = smul.u32 8, %s19
      %p184 = scmp.lt.s32.totalorder %s18, 1
      %s185 = scalar_select %p184, %s18, 1
      %p186 = scmp.lt.s32.totalorder %s183, 15
      %s187 = scalar_select %p186, %s183, 15
      %s188 = smul.addr %s187, 2
      %s189 = smul.addr %s185, 32
      %s190 = sadd.s32 %s188, %s189
      %s191 = smul.addr %s190, 8
      %s192 = scalar_lea.vmem %s3, %s191
      %s193 = smul.u32 8, %s19
      %p194 = scmp.lt.s32.totalorder %s18, 1
      %s195 = scalar_select %p194, %s18, 1
      %p196 = scmp.lt.s32.totalorder %s193, 15
      %s197 = scalar_select %p196, %s193, 15
      %s198 = smul.addr %s197, 2
      %s199 = smul.addr %s195, 32
      %s200 = sadd.s32 %s198, %s199
      %s201 = smul.addr %s200, 8
      %s202 = scalar_lea.vmem %s0, %s201
      %s203 = smul.u32 8, %s19
      %s204 = smul.u32 8, %s19
      %p205 = scmp.lt.s32.totalorder %s18, 1
      %s206 = scalar_select %p205, %s18, 1
      %p207 = scmp.lt.s32.totalorder %s204, 15
      %s208 = scalar_select %p207, %s204, 15
      %s209 = smul.addr %s208, 2
      %s210 = smul.addr %s206, 32
      %s211 = sadd.s32 %s209, %s210
      %s212 = smul.addr %s211, 8
      %s213 = scalar_lea.vmem %s3, %s212
      %s214 = smul.u32 8, %s19
      %v215 = vld [vmem:[%s202] sm:$0xff]
      %v216 = vld [vmem:[%s202 + $0x8] sm:$0xff]
      %v217 = vld [vmem:[%s202 + $0x10] sm:$0xff]
      %v218 = vld [vmem:[%s202 + $0x18] sm:$0xff]
      %v219 = vld [vmem:[%s202 + $0x20] sm:$0xff]
      %v220 = vld [vmem:[%s202 + $0x28] sm:$0xff]
      %v221 = vld [vmem:[%s202 + $0x30] sm:$0xff]
      %v222 = vld [vmem:[%s202 + $0x38] sm:$0xff]
      %v223 = vld [vmem:[%s202 + $0x40] sm:$0xff]
      %v224 = vld [vmem:[%s202 + $0x48] sm:$0xff]
      %v225 = vld [vmem:[%s202 + $0x50] sm:$0xff]
      %v226 = vld [vmem:[%s202 + $0x58] sm:$0xff]
      %v227 = vld [vmem:[%s202 + $0x60] sm:$0xff]
      %v228 = vld [vmem:[%s202 + $0x68] sm:$0xff]
      %v229 = vld [vmem:[%s202 + $0x70] sm:$0xff]
      %v230 = vld [vmem:[%s202 + $0x78] sm:$0xff]
      %v231 = vld [vmem:[%s1] sm:$0x1]
      %v232 = vld [vmem:[%s2] sm:$0x1]
      %v234 = vlaneseq
      %v235 = vshrl.u32 %v234, 7
      %v236 = vsub.s32 0, %v235
      %v237 = vrot.slane %v231, %v236
      %v239 = vmul.f32 %v215, %v237
      %v240 = vmul.f32 %v216, %v237
      %v241 = vmul.f32 %v217, %v237
      %v242 = vmul.f32 %v218, %v237
      %v243 = vmul.f32 %v219, %v237
      %v244 = vmul.f32 %v220, %v237
      %v245 = vmul.f32 %v221, %v237
      %v246 = vmul.f32 %v222, %v237
      %v247 = vmul.f32 %v223, %v237
      %v248 = vmul.f32 %v224, %v237
      %v249 = vmul.f32 %v225, %v237
      %v250 = vmul.f32 %v226, %v237
      %v251 = vmul.f32 %v227, %v237
      %v252 = vmul.f32 %v228, %v237
      %v253 = vmul.f32 %v229, %v237
      %v254 = vmul.f32 %v230, %v237
      %v256 = vlaneseq
      %v257 = vshrl.u32 %v256, 7
      %v258 = vsub.s32 0, %v257
      %v259 = vrot.slane %v232, %v258
      %v261 = vadd.f32 %v239, %v259
      %v262 = vadd.f32 %v240, %v259
      %v263 = vadd.f32 %v241, %v259
      %v264 = vadd.f32 %v242, %v259
      %v265 = vadd.f32 %v243, %v259
      %v266 = vadd.f32 %v244, %v259
      %v267 = vadd.f32 %v245, %v259
      %v268 = vadd.f32 %v246, %v259
      %v269 = vadd.f32 %v247, %v259
      %v270 = vadd.f32 %v248, %v259
      %v271 = vadd.f32 %v249, %v259
      %v272 = vadd.f32 %v250, %v259
      %v273 = vadd.f32 %v251, %v259
      %v274 = vadd.f32 %v252, %v259
      %v275 = vadd.f32 %v253, %v259
      %v276 = vadd.f32 %v254, %v259
      %v277 = vmax.f32 %v261, 0.0
      %v278 = vmax.f32 %v262, 0.0
      %v279 = vmax.f32 %v263, 0.0
      %v280 = vmax.f32 %v264, 0.0
      %v281 = vmax.f32 %v265, 0.0
      %v282 = vmax.f32 %v266, 0.0
      %v283 = vmax.f32 %v267, 0.0
      %v284 = vmax.f32 %v268, 0.0
      %v285 = vmax.f32 %v269, 0.0
      %v286 = vmax.f32 %v270, 0.0
      %v287 = vmax.f32 %v271, 0.0
      %v288 = vmax.f32 %v272, 0.0
      %v289 = vmax.f32 %v273, 0.0
      %v290 = vmax.f32 %v274, 0.0
      %v291 = vmax.f32 %v275, 0.0
      %v292 = vmax.f32 %v276, 0.0
      %293 = vst [vmem:[%s213] sm:$0xff] %v277
      %294 = vst [vmem:[%s213 + $0x8] sm:$0xff] %v278
      %295 = vst [vmem:[%s213 + $0x10] sm:$0xff] %v279
      %296 = vst [vmem:[%s213 + $0x18] sm:$0xff] %v280
      %297 = vst [vmem:[%s213 + $0x20] sm:$0xff] %v281
      %298 = vst [vmem:[%s213 + $0x28] sm:$0xff] %v282
      %299 = vst [vmem:[%s213 + $0x30] sm:$0xff] %v283
      %300 = vst [vmem:[%s213 + $0x38] sm:$0xff] %v284
      %301 = vst [vmem:[%s213 + $0x40] sm:$0xff] %v285
      %302 = vst [vmem:[%s213 + $0x48] sm:$0xff] %v286
      %303 = vst [vmem:[%s213 + $0x50] sm:$0xff] %v287
      %304 = vst [vmem:[%s213 + $0x58] sm:$0xff] %v288
      %305 = vst [vmem:[%s213 + $0x60] sm:$0xff] %v289
      %306 = vst [vmem:[%s213 + $0x68] sm:$0xff] %v290
      %307 = vst [vmem:[%s213 + $0x70] sm:$0xff] %v291
      %308 = vst [vmem:[%s213 + $0x78] sm:$0xff] %v292
      %s309 = smul.u32 8, %s19
      %p310 = scmp.lt.s32.totalorder %s18, 1
      %s311 = scalar_select %p310, %s18, 1
      %p312 = scmp.lt.s32.totalorder %s309, 15
      %s313 = scalar_select %p312, %s309, 15
      %s314 = smul.addr %s313, 2
      %s315 = smul.addr %s311, 32
      %s316 = sadd.s32 %s314, %s315
      %s317 = smul.addr %s316, 8
      %s318 = scalar_lea.vmem %s3, %s317
      // Predicated region
      $region33: #{conv_bn_relu.3} parent=31 // pred_check
        %p319 = pneg %p116
      $region34: #{conv_bn_relu.3} parent=31 // pred_check_branch
        %321 = sbr.rel (%p319) target = $region36
      $region35: #{conv_bn_relu.3} parent=31 // pred_region
        %s322 = smul.u32 8, %s19
      $region36: #{conv_bn_relu.3} parent=31 // pred_fallthru
        _
    $region32: #{conv_bn_relu.3} parent=5 // pred_fallthru
      _
    %p323 = scmp.le.s32.totalorder 2, %s9
    // Predicated region
    $region37: #{conv_bn_relu.3} parent=5 // pred_check
      %p324 = pneg %p323
    $region38: #{conv_bn_relu.3} parent=5 // pred_check_branch
      %326 = sbr.rel (%p324) target = $region40
    $region39: #{conv_bn_relu.3} parent=5 // pred_region
      %s327 = ssub.s32 %s9, 2
      // Predicated region
      $region41: #{conv_bn_relu.3} parent=39 // pred_check
        %p328 = pneg %p122
      $region42: #{conv_bn_relu.3} parent=39 // pred_check_branch
        %330 = sbr.rel (%p328) target = $region44
      $region43: #{conv_bn_relu.3} parent=39 // pred_region
        %s331 = smul.u32 8, %s21
        %p332 = scmp.lt.s32.totalorder %s20, 1
        %s333 = scalar_select %p332, %s20, 1
        %p334 = scmp.lt.s32.totalorder %s331, 15
        %s335 = scalar_select %p334, %s331, 15
        %s336 = smul.addr %s335, 2
        %s337 = smul.addr %s333, 32
        %s338 = sadd.s32 %s336, %s337
        %s339 = smul.addr %s338, 8
        %s340 = scalar_lea.vmem %s3, %s339
      $region44: #{conv_bn_relu.3} parent=39 // pred_fallthru
        _
    $region40: #{conv_bn_relu.3} parent=5 // pred_fallthru
      _
  $region6: #{conv_bn_relu.3} parent=0 // loop_footer
    %s13 = sadd.s32 1, %s9
  $region7: #{conv_bn_relu.3} parent=0 // loop_footer_branch
    %8 = sbr.rel target = $region3
  $region8: #{conv_bn_relu.3} parent=0 // loop_exit
    _

// kernel: conv_bn_relu.2
$region0: #{conv_bn_relu.2}
  #allocation0 [shape = 'u32[]', space=smem, size = 0x4, offset = 0x4, fixed_abs, tag = 'smem constant byte address 0x4 - core index']
  #allocation1 [shape = 'u32[144,128]{1,0:T(1,128)}', space=vmem, size = 0x12000, scoped, tag = 'internal scratch']
  #allocation2 [shape = 'f32[2,10,18,128]{3,2,1,0:T(8,128)}', space=vmem, size = 0x3c000, scoped, tag = 'scratch operand']
  #allocation3 [shape = 's32[2]{0}', space=sflag, size = 0x8, scoped, tag = 'scratch operand']
  #allocation4 [shape = 's32[]', space=sflag, size = 0x4, offset = 0, fixed_abs, tag = 'sflag constant byte address 0x0 - dummy sync flag']
  #allocation5 [shape = 's32[]', space=sflag, size = 0x4, offset = 0, fixed_abs, tag = 'sflag constant byte address 0x0 - dummy sync flag']
  %s0 = inlined_call_operand.vmem [shape: f32[2,18,18,128], index: 0, kind: input, shape index: {}]
  %s1 = inlined_call_operand.vmem [shape: f32[1152,128], index: 1, kind: input, shape index: {}]
  %s2 = inlined_call_operand.vmem [shape: f32[2,16,16,128], index: 2, kind: output, shape index: {0}]
  %s3 = inlined_call_operand.vmem [shape: f32[2,1,128], index: 3, kind: output, shape index: {1}]
  %s4 = inlined_call_operand.vmem [shape: f32[2,1,128], index: 4, kind: output, shape index: {2}]
  %5 = xla_tuple %s2, %s3, %s4
  %s6 = sld [smem:[#allocation0]]
  $region139: #{conv_bn_relu.2} parent=0
    _
  %s8 = ssub.s32 1, %s6
  %s9 = scalar_select 0, %s8, %s6
  loop: start=0, step=1, limit=6
  $region2: #{conv_bn_relu.2} parent=0 // loop_pre_header
    _
  $region3: #{conv_bn_relu.2} parent=0 // loop_header
    %s11 = sphi 0, %s15
    %p12 = scmp.ge.s32.totalorder %s11, 6
    %s18 = sphi 0, %s30
    %s19 = sphi 0, %s26
    %s20 = sphi 0, %s18
    %s21 = sphi 0, %s19
    %s22 = sphi 0, %s20
    %s23 = sphi 0, %s21
    %s31 = sphi 0, %s31
    %s33 = sphi 0, %s31
    %s34 = sphi 0, %s33
    %s48 = sphi 0, %s34
    %s56 = sphi 0, %s58
    %s59 = sphi 0, %s56
    %s60 = sphi 0, %s59
    %s76 = sphi 0, %s60
    %s82 = sphi 0, %s84
    %s85 = sphi 0, %s82
    %s86 = sphi 0, %s85
    %s102 = sphi 0, %s86
    %s108 = sphi 0, %s110
    %s111 = sphi 0, %s108
    %s112 = sphi 0, %s111
    %s128 = sphi 0, %s112
  $region4: #{conv_bn_relu.2} parent=0 // loop_header_branch
    %14 = sbr.rel (%p12) target = $region8
  $region5: #{conv_bn_relu.2} parent=0 // loop_body
    %s16 = ssub.s32 %s11, 1
    %s17 = ssub.s32 %s11, 2
    %s24 = sadd.s32 1, %s19
    %p25 = scmp.ge.s32.totalorder %s24, 2
    %s26 = scalar_select %p25, 0, %s24
    %s27 = sadd.s32 1, %s18
    %s28 = scalar_select %p25, %s27, %s18
    %p29 = scmp.ge.s32.totalorder %s28, 2
    %s30 = scalar_select %p29, 0, %s28
    %s32 = sadd.s32 %s31, 1
    %p35 = scmp.eq.s32.totalorder %s11, 3
    %p36 = scmp.ne.s32.totalorder %s31, %s33
    %p37 = scmp.eq.s32.totalorder %s11, 0
    %p38 = por %p36, %p37
    %p39 = scmp.ne.s32.totalorder %s31, %s33
    %p40 = scmp.eq.s32.totalorder %s16, 3
    %p41 = por %p39, %p40
    %p42 = scmp.ne.s32.totalorder %s33, %s34
    %p43 = scmp.eq.s32.totalorder %s16, 0
    %p44 = por %p42, %p43
    %p45 = scmp.ne.s32.totalorder %s33, %s34
    %p46 = scmp.eq.s32.totalorder %s17, 3
    %p47 = por %p45, %p46
    %p49 = scmp.ne.s32.totalorder %s34, %s48
    %p50 = scmp.eq.s32.totalorder %s17, 0
    %p51 = por %p49, %p50
    %s52 = ssub.s32 %s18, %s30
    %s53 = ssub.s32 %s19, %s26
    %s54 = sor.u32 %s52, %s53
    %p55 = scmp.eq.s32.totalorder %s54, 0
    %s57 = sadd.s32 %s56, 1
    %s58 = scalar_select %p55, %s56, %s57
    %p61 = pneg %p55
    %p62 = scmp.eq.s32.totalorder %s11, 3
    %p63 = por %p61, %p62
    %p64 = scmp.ne.s32.totalorder %s56, %s59
    %p65 = scmp.eq.s32.totalorder %s11, 0
    %p66 = por %p64, %p65
    %p67 = scmp.ne.s32.totalorder %s56, %s59
    %p68 = scmp.eq.s32.totalorder %s16, 3
    %p69 = por %p67, %p68
    %p70 = scmp.ne.s32.totalorder %s59, %s60
    %p71 = scmp.eq.s32.totalorder %s16, 0
    %p72 = por %p70, %p71
    %p73 = scmp.ne.s32.totalorder %s59, %s60
    %p74 = scmp.eq.s32.totalorder %s17, 3
    %p75 = por %p73, %p74
    %p77 = scmp.ne.s32.totalorder %s60, %s76
    %p78 = scmp.eq.s32.totalorder %s17, 0
    %p79 = por %p77, %p78
    %s80 = ssub.s32 %s18, %s30
    %p81 = scmp.eq.s32.totalorder %s80, 0
    %s83 = sadd.s32 %s82, 1
    %s84 = scalar_select %p81, %s82, %s83
    %p87 = pneg %p81
    %p88 = scmp.eq.s32.totalorder %s11, 3
    %p89 = por %p87, %p88
    %p90 = scmp.ne.s32.totalorder %s82, %s85
    %p91 = scmp.eq.s32.totalorder %s11, 0
    %p92 = por %p90, %p91
    %p93 = scmp.ne.s32.totalorder %s82, %s85
    %p94 = scmp.eq.s32.totalorder %s16, 3
    %p95 = por %p93, %p94
    %p96 = scmp.ne.s32.totalorder %s85, %s86
    %p97 = scmp.eq.s32.totalorder %s16, 0
    %p98 = por %p96, %p97
    %p99 = scmp.ne.s32.totalorder %s85, %s86
    %p100 = scmp.eq.s32.totalorder %s17, 3
    %p101 = por %p99, %p100
    %p103 = scmp.ne.s32.totalorder %s86, %s102
    %p104 = scmp.eq.s32.totalorder %s17, 0
    %p105 = por %p103, %p104
    %s106 = ssub.s32 %s18, %s30
    %p107 = scmp.eq.s32.totalorder %s106, 0
    %s109 = sadd.s32 %s108, 1
    %s110 = scalar_select %p107, %s108, %s109
    %p113 = pneg %p107
    %p114 = scmp.eq.s32.totalorder %s11, 3
    %p115 = por %p113, %p114
    %p116 = scmp.ne.s32.totalorder %s108, %s111
    %p117 = scmp.eq.s32.totalorder %s11, 0
    %p118 = por %p116, %p117
    %p119 = scmp.ne.s32.totalorder %s108, %s111
    %p120 = scmp.eq.s32.totalorder %s16, 3
    %p121 = por %p119, %p120
    %p122 = scmp.ne.s32.totalorder %s111, %s112
    %p123 = scmp.eq.s32.totalorder %s16, 0
    %p124 = por %p122, %p123
    %p125 = scmp.ne.s32.totalorder %s111, %s112
    %p126 = scmp.eq.s32.totalorder %s17, 3
    %p127 = por %p125, %p126
    %p129 = scmp.ne.s32.totalorder %s112, %s128
    %p130 = scmp.eq.s32.totalorder %s17, 0
    %p131 = por %p129, %p130
    %p132 = scmp.le.s32.totalorder 1, %s11
    %p133 = scmp.lt.s32.totalorder %s11, 5
    %p134 = pnand %p132, %p133
    %p135 = pneg %p134
    // Predicated region
    $region9: #{conv_bn_relu.2} parent=5 // pred_check
      _
    $region10: #{conv_bn_relu.2} parent=5 // pred_check_branch
      %137 = sbr.rel (%p134) target = $region12
    $region11: #{conv_bn_relu.2} parent=5 // pred_region
      %s138 = ssub.s32 %s11, 1
      // Predicated region
      $region13: #{conv_bn_relu.2} parent=11 // pred_check
        %p139 = pneg %p44
      $region14: #{conv_bn_relu.2} parent=11 // pred_check_branch
        %141 = sbr.rel (%p139) target = $region16
      $region15: #{conv_bn_relu.2} parent=11 // pred_region
        _
      $region16: #{conv_bn_relu.2} parent=11 // pred_fallthru
        _
    $region12: #{conv_bn_relu.2} parent=5 // pred_fallthru
      _
    %p142 = scmp.lt.s32.totalorder %s11, 4
    // Predicated region
    $region17: #{conv_bn_relu.2} parent=5 // pred_check
      %p143 = pneg %p142
    $region18: #{conv_bn_relu.2} parent=5 // pred_check_branch
      %145 = sbr.rel (%p143) target = $region20
    $region19: #{conv_bn_relu.2} parent=5 // pred_region
      _
    $region20: #{conv_bn_relu.2} parent=5 // pred_fallthru
      _
    %p146 = scmp.le.s32.totalorder 1, %s11
    %p147 = scmp.lt.s32.totalorder %s11, 5
    %p148 = pnand %p146, %p147
    %p149 = pneg %p148
    // Predicated region
    $region21: #{conv_bn_relu.2} parent=5 // pred_check
      _
    $region22: #{conv_bn_relu.2} parent=5 // pred_check_branch
      %151 = sbr.rel (%p148) target = $region24
    $region23: #{conv_bn_relu.2} parent=5 // pred_region
      %s152 = ssub.s32 %s11, 1
      %p153 = pneg %p44
      %p154 = pneg %p41
      %p155 = pneg %p72
      %p156 = pneg %p69
      %s157 = smul.u32 8, %s21
      %p158 = scmp.lt.s32.totalorder %s20, 1
      %s159 = scalar_select %p158, %s20, 1
      %p160 = scmp.lt.s32.totalorder %s157, 15
      %s161 = scalar_select %p160, %s157, 15
      %s162 = smul.addr %s161, 2
      %s163 = smul.addr %s159, 32
      %s164 = sadd.s32 %s162, %s163
      %s165 = smul.addr %s164, 8
      %s166 = scalar_lea.vmem %s2, %s165
      %p167 = pneg %p98
      %p168 = pneg %p95
      %p169 = scmp.lt.s32.totalorder %s20, 1
      %s170 = scalar_select %p169, %s20, 1
      %s171 = scalar_lea.vmem %s3, %s170
      %p172 = pneg %p124
      %p173 = pneg %p121
      %p174 = scmp.lt.s32.totalorder %s20, 1
      %s175 = scalar_select %p174, %s20, 1
      %s176 = scalar_lea.vmem %s4, %s175
      %s177 = smul.u32 8, %s21
      %p178 = scmp.lt.s32.totalorder %s20, 1
      %s179 = scalar_select %p178, %s20, 1
      %p180 = scmp.lt.s32.totalorder %s177, 15
      %s181 = scalar_select %p180, %s177, 15
      %s182 = smul.addr %s181, 2
      %s183 = smul.addr %s179, 32
      %s184 = sadd.s32 %s182, %s183
      %s185 = smul.addr %s184, 8
      %s186 = scalar_lea.vmem %s2, %s185
      %s187 = smul.u32 8, %s21
      %p188 = scmp.lt.s32.totalorder %s20, 1
      %s189 = scalar_select %p188, %s20, 1
      %s190 = scalar_lea.vmem %s3, %s189
      %p191 = scmp.lt.s32.totalorder %s20, 1
      %s192 = scalar_select %p191, %s20, 1
      %s193 = scalar_lea.vmem %s4, %s192
      %s194 = sand.u32 %s21, 1
      %p195 = scmp.eq.s32.totalorder %s21, 0
      // Predicated region
      $region25: #{conv_bn_relu.2} parent=23 // pred_check
        %p196 = pneg %p195
      $region26: #{conv_bn_relu.2} parent=23 // pred_check_branch
        %198 = sbr.rel (%p196) target = $region28
      $region27: #{conv_bn_relu.2} parent=23 // pred_region
        %s199 = smul.u32 %s20, 432
        %s200 = scalar_lea.vmem %s0, %s199
        %p202 = scmp.lt.u32.totalorder 18, 8
        %p203 = pneg %p202
        // Predicated region
        $region29: #{conv_bn_relu.2} parent=27 // pred_check
          _
        $region30: #{conv_bn_relu.2} parent=27 // pred_check_branch
          %205 = sbr.rel (%p202) target = $region32
        $region31: #{conv_bn_relu.2} parent=27 // pred_region
          %s238 = sand.u32 18, 7
          %p239 = scmp.eq.s32.totalorder %s238, 0
          %p240 = pneg %p239
          // Predicated region
          $region44: #{conv_bn_relu.2} parent=31 // pred_check
            _
          $region45: #{conv_bn_relu.2} parent=31 // pred_check_branch
            %242 = sbr.rel (%p239) target = $region47
          $region46: #{conv_bn_relu.2} parent=31 // pred_region
            %s243 = sand.u32 18, 7
            %s244 = ssub.s32 18, %s243
            %s245 = scalar_lea.vmem %s200, %s244
            %s246 = ssub.s32 18, %s243
            %s247 = scalar_lea.vmem [#allocation2], %s246
            loop: start=0, step=1, limit=1
            $region48: #{conv_bn_relu.2} parent=46 // loop_pre_header
              _
            $region49: #{conv_bn_relu.2} parent=46 // loop_header
              %s249 = sphi 0, %s253
              %p250 = scmp.ge.s32.totalorder %s249, 1
              %s254 = sphi %s200, %s200
              %s255 = sphi [#allocation2], [#allocation2]
            $region50: #{conv_bn_relu.2} parent=46 // loop_header_branch
              %252 = sbr.rel (%p250) target = $region54
            $region51: #{conv_bn_relu.2} parent=46 // loop_body
              %v256 = vld [vmem:[%s254] sm:$0xff]
              %257 = vst [vmem:[%s255] sm:$0xff] %v256
              %v258 = vld [vmem:[%s254 + $0x8] sm:$0xff]
              %259 = vst [vmem:[%s255 + $0x8] sm:$0xff] %v258
              %v260 = vld [vmem:[%s254 + $0x18] sm:$0xff]
              %261 = vst [vmem:[%s255 + $0x18] sm:$0xff] %v260
              %v262 = vld [vmem:[%s254 + $0x20] sm:$0xff]
              %263 = vst [vmem:[%s255 + $0x20] sm:$0xff] %v262
              %v264 = vld [vmem:[%s254 + $0x30] sm:$0xff]
              %265 = vst [vmem:[%s255 + $0x30] sm:$0xff] %v264
              %v266 = vld [vmem:[%s254 + $0x38] sm:$0xff]
              %267 = vst [vmem:[%s255 + $0x38] sm:$0xff] %v266
              %v268 = vld [vmem:[%s254 + $0x48] sm:$0xff]
              %269 = vst [vmem:[%s255 + $0x48] sm:$0xff] %v268
              %v270 = vld [vmem:[%s254 + $0x50] sm:$0xff]
              %271 = vst [vmem:[%s255 + $0x50] sm:$0xff] %v270
              %v272 = vld [vmem:[%s254 + $0x60] sm:$0xff]
              %273 = vst [vmem:[%s255 + $0x60] sm:$0xff] %v272
              %v274 = vld [vmem:[%s254 + $0x68] sm:$0xff]
              %275 = vst [vmem:[%s255 + $0x68] sm:$0xff] %v274
              %v276 = vld [vmem:[%s254 + $0x78] sm:$0xff]
              %277 = vst [vmem:[%s255 + $0x78] sm:$0xff] %v276
              %v278 = vld [vmem:[%s254 + $0x80] sm:$0xff]
              %279 = vst [vmem:[%s255 + $0x80] sm:$0xff] %v278
              %v280 = vld [vmem:[%s254 + $0x90] sm:$0xff]
              %281 = vst [vmem:[%s255 + $0x90] sm:$0xff] %v280
              %v282 = vld [vmem:[%s254 + $0x98] sm:$0xff]
              %283 = vst [vmem:[%s255 + $0x98] sm:$0xff] %v282
              %v284 = vld [vmem:[%s254 + $0xa8] sm:$0xff]
              %285 = vst [vmem:[%s255 + $0xa8] sm:$0xff] %v284
              %v286 = vld [vmem:[%s254 + $0xb0] sm:$0xff]
              %287 = vst [vmem:[%s255 + $0xb0] sm:$0xff] %v286
              %v288 = vld [vmem:[%s254 + $0xc0] sm:$0xff]
              %289 = vst [vmem:[%s255 + $0xc0] sm:$0xff] %v288
              %v290 = vld [vmem:[%s254 + $0xc8] sm:$0xff]
              %291 = vst [vmem:[%s255 + $0xc8] sm:$0xff] %v290
              %v292 = vld [vmem:[%s254 + $0xd8] sm:$0xff]
              %293 = vst [vmem:[%s255 + $0xd8] sm:$0xff] %v292
              %v294 = vld [vmem:[%s254 + $0xe0] sm:$0xff]
              %295 = vst [vmem:[%s255 + $0xe0] sm:$0xff] %v294
            $region52: #{conv_bn_relu.2} parent=46 // loop_footer
              %s253 = sadd.s32 1, %s249
            $region53: #{conv_bn_relu.2} parent=46 // loop_footer_branch
              %248 = sbr.rel target = $region49
            $region54: #{conv_bn_relu.2} parent=46 // loop_exit
              _
            %s296 = sshllo.u32 0, %s243
            loop: start=0, step=1, limit=1
            $region55: #{conv_bn_relu.2} parent=46 // loop_pre_header
              _
            $region56: #{conv_bn_relu.2} parent=46 // loop_header
              %s298 = sphi 0, %s302
              %p299 = scmp.ge.s32.totalorder %s298, 1
              %s303 = sphi %s245, %s245
              %s304 = sphi %s247, %s247
            $region57: #{conv_bn_relu.2} parent=46 // loop_header_branch
              %301 = sbr.rel (%p299) target = $region61
            $region58: #{conv_bn_relu.2} parent=46 // loop_body
              %v305 = vld [vmem:[%s303] sm:%s296]
              %306 = vst [vmem:[%s304] sm:%s296] %v305
              %v307 = vld [vmem:[%s303 + $0x18] sm:%s296]
              %308 = vst [vmem:[%s304 + $0x18] sm:%s296] %v307
              %v309 = vld [vmem:[%s303 + $0x30] sm:%s296]
              %310 = vst [vmem:[%s304 + $0x30] sm:%s296] %v309
              %v311 = vld [vmem:[%s303 + $0x48] sm:%s296]
              %312 = vst [vmem:[%s304 + $0x48] sm:%s296] %v311
              %v313 = vld [vmem:[%s303 + $0x60] sm:%s296]
              %314 = vst [vmem:[%s304 + $0x60] sm:%s296] %v313
              %v315 = vld [vmem:[%s303 + $0x78] sm:%s296]
              %316 = vst [vmem:[%s304 + $0x78] sm:%s296] %v315
              %v317 = vld [vmem:[%s303 + $0x90] sm:%s296]
              %318 = vst [vmem:[%s304 + $0x90] sm:%s296] %v317
              %v319 = vld [vmem:[%s303 + $0xa8] sm:%s296]
              %320 = vst [vmem:[%s304 + $0xa8] sm:%s296] %v319
              %v321 = vld [vmem:[%s303 + $0xc0] sm:%s296]
              %322 = vst [vmem:[%s304 + $0xc0] sm:%s296] %v321
              %v323 = vld [vmem:[%s303 + $0xd8] sm:%s296]
              %324 = vst [vmem:[%s304 + $0xd8] sm:%s296] %v323
            $region59: #{conv_bn_relu.2} parent=46 // loop_footer
              %s302 = sadd.s32 1, %s298
            $region60: #{conv_bn_relu.2} parent=46 // loop_footer_branch
              %297 = sbr.rel target = $region56
            $region61: #{conv_bn_relu.2} parent=46 // loop_exit
              _
          $region47: #{conv_bn_relu.2} parent=31 // pred_fallthru
            _
        $region32: #{conv_bn_relu.2} parent=27 // pred_fallthru
          _
        // Predicated region
        $region33: #{conv_bn_relu.2} parent=27 // pred_check
          %p206 = pneg %p202
        $region34: #{conv_bn_relu.2} parent=27 // pred_check_branch
          %208 = sbr.rel (%p206) target = $region36
        $region35: #{conv_bn_relu.2} parent=27 // pred_region
          %s209 = sshllo.u32 0, 18
          loop: start=0, step=1, limit=1
          $region37: #{conv_bn_relu.2} parent=35 // loop_pre_header
            _
          $region38: #{conv_bn_relu.2} parent=35 // loop_header
            %s211 = sphi 0, %s215
            %p212 = scmp.ge.s32.totalorder %s211, 1
            %s216 = sphi %s200, %s200
            %s217 = sphi [#allocation2], [#allocation2]
          $region39: #{conv_bn_relu.2} parent=35 // loop_header_branch
            %214 = sbr.rel (%p212) target = $region43
          $region40: #{conv_bn_relu.2} parent=35 // loop_body
            %v218 = vld [vmem:[%s216] sm:%s209]
            %219 = vst [vmem:[%s217] sm:%s209] %v218
            %v220 = vld [vmem:[%s216 + $0x18] sm:%s209]
            %221 = vst [vmem:[%s217 + $0x18] sm:%s209] %v220
            %v222 = vld [vmem:[%s216 + $0x30] sm:%s209]
            %223 = vst [vmem:[%s217 + $0x30] sm:%s209] %v222
            %v224 = vld [vmem:[%s216 + $0x48] sm:%s209]
            %225 = vst [vmem:[%s217 + $0x48] sm:%s209] %v224
            %v226 = vld [vmem:[%s216 + $0x60] sm:%s209]
            %227 = vst [vmem:[%s217 + $0x60] sm:%s209] %v226
            %v228 = vld [vmem:[%s216 + $0x78] sm:%s209]
            %229 = vst [vmem:[%s217 + $0x78] sm:%s209] %v228
            %v230 = vld [vmem:[%s216 + $0x90] sm:%s209]
            %231 = vst [vmem:[%s217 + $0x90] sm:%s209] %v230
            %v232 = vld [vmem:[%s216 + $0xa8] sm:%s209]
            %233 = vst [vmem:[%s217 + $0xa8] sm:%s209] %v232
            %v234 = vld [vmem:[%s216 + $0xc0] sm:%s209]
            %235 = vst [vmem:[%s217 + $0xc0] sm:%s209] %v234
            %v236 = vld [vmem:[%s216 + $0xd8] sm:%s209]
            %237 = vst [vmem:[%s217 + $0xd8] sm:%s209] %v236
          $region41: #{conv_bn_relu.2} parent=35 // loop_footer
            %s215 = sadd.s32 1, %s211
          $region42: #{conv_bn_relu.2} parent=35 // loop_footer_branch
            %210 = sbr.rel target = $region38
          $region43: #{conv_bn_relu.2} parent=35 // loop_exit
            _
        $region36: #{conv_bn_relu.2} parent=27 // pred_fallthru
          _
        // Predicated region
        $region62: #{conv_bn_relu.2} parent=27 // pred_check
          _
        $region63: #{conv_bn_relu.2} parent=27 // pred_check_branch
          %327 = sbr.rel (0) target = $region65
        $region64: #{conv_bn_relu.2} parent=27 // pred_region
          %328 = vsyncadd [#allocation3], 2880
        $region65: #{conv_bn_relu.2} parent=27 // pred_fallthru
          _
      $region28: #{conv_bn_relu.2} parent=23 // pred_fallthru
        _
      %s329 = smul.u32 %s194, 240
      %s330 = scalar_lea.vmem [#allocation2], %s329
      %s331 = scalar_lea.sflag [#allocation3], %s194
      %s332 = smul.u32 10, 18
      %s333 = smul.u32 %s332, 1
      %s334 = sshll.u32 %s333, 4
      %335 = dma.done %s331, %s334
      %s336 = sadd.s32 %s21, 1
      %p337 = scmp.lt.s32.totalorder %s336, 2
      // Predicated region
      $region66: #{conv_bn_relu.2} parent=23 // pred_check
        %p338 = pneg %p337
      $region67: #{conv_bn_relu.2} parent=23 // pred_check_branch
        %340 = sbr.rel (%p338) target = $region69
      $region68: #{conv_bn_relu.2} parent=23 // pred_region
        %s341 = ssub.s32 1, %s194
        %s342 = smul.u32 %s336, 8
        %s343 = smul.u32 %s342, 24
        %s344 = smul.u32 %s20, 432
        %s345 = sadd.s32 %s343, %s344
        %s346 = scalar_lea.vmem %s0, %s345
        %s347 = smul.u32 %s341, 240
        %s348 = scalar_lea.vmem [#allocation2], %s347
        %s349 = scalar_lea.sflag [#allocation3], %s341
        %p351 = scmp.lt.u32.totalorder 18, 8
        %p352 = pneg %p351
        // Predicated region
        $region70: #{conv_bn_relu.2} parent=68 // pred_check
          _
        $region71: #{conv_bn_relu.2} parent=68 // pred_check_branch
          %354 = sbr.rel (%p351) target = $region73
        $region72: #{conv_bn_relu.2} parent=68 // pred_region
          %s387 = sand.u32 18, 7
          %p388 = scmp.eq.s32.totalorder %s387, 0
          %p389 = pneg %p388
          // Predicated region
          $region85: #{conv_bn_relu.2} parent=72 // pred_check
            _
          $region86: #{conv_bn_relu.2} parent=72 // pred_check_branch
            %391 = sbr.rel (%p388) target = $region88
          $region87: #{conv_bn_relu.2} parent=72 // pred_region
            %s392 = sand.u32 18, 7
            %s393 = ssub.s32 18, %s392
            %s394 = scalar_lea.vmem %s346, %s393
            %s395 = ssub.s32 18, %s392
            %s396 = scalar_lea.vmem %s348, %s395 [#allocation2]
            loop: start=0, step=1, limit=1
            $region89: #{conv_bn_relu.2} parent=87 // loop_pre_header
              _
            $region90: #{conv_bn_relu.2} parent=87 // loop_header
              %s398 = sphi 0, %s402
              %p399 = scmp.ge.s32.totalorder %s398, 1
              %s403 = sphi %s346, %s346
              %s404 = sphi %s348, %s348
            $region91: #{conv_bn_relu.2} parent=87 // loop_header_branch
              %401 = sbr.rel (%p399) target = $region95
            $region92: #{conv_bn_relu.2} parent=87 // loop_body
              %v405 = vld [vmem:[%s403] sm:$0xff]
              %406 = vst [vmem:[%s404] sm:$0xff] %v405
              %v407 = vld [vmem:[%s403 + $0x8] sm:$0xff]
              %408 = vst [vmem:[%s404 + $0x8] sm:$0xff] %v407
              %v409 = vld [vmem:[%s403 + $0x18] sm:$0xff]
              %410 = vst [vmem:[%s404 + $0x18] sm:$0xff] %v409
              %v411 = vld [vmem:[%s403 + $0x20] sm:$0xff]
              %412 = vst [vmem:[%s404 + $0x20] sm:$0xff] %v411
              %v413 = vld [vmem:[%s403 + $0x30] sm:$0xff]
              %414 = vst [vmem:[%s404 + $0x30] sm:$0xff] %v413
              %v415 = vld [vmem:[%s403 + $0x38] sm:$0xff]
              %416 = vst [vmem:[%s404 + $0x38] sm:$0xff] %v415
              %v417 = vld [vmem:[%s403 + $0x48] sm:$0xff]
              %418 = vst [vmem:[%s404 + $0x48] sm:$0xff] %v417
              %v419 = vld [vmem:[%s403 + $0x50] sm:$0xff]
              %420 = vst [vmem:[%s404 + $0x50] sm:$0xff] %v419
              %v421 = vld [vmem:[%s403 + $0x60] sm:$0xff]
              %422 = vst [vmem:[%s404 + $0x60] sm:$0xff] %v421
              %v423 = vld [vmem:[%s403 + $0x68] sm:$0xff]
              %424 = vst [vmem:[%s404 + $0x68] sm:$0xff] %v423
              %v425 = vld [vmem:[%s403 + $0x78] sm:$0xff]
              %426 = vst [vmem:[%s404 + $0x78] sm:$0xff] %v425
              %v427 = vld [vmem:[%s403 + $0x80] sm:$0xff]
              %428 = vst [vmem:[%s404 + $0x80] sm:$0xff] %v427
              %v429 = vld [vmem:[%s403 + $0x90] sm:$0xff]
              %430 = vst [vmem:[%s404 + $0x90] sm:$0xff] %v429
              %v431 = vld [vmem:[%s403 + $0x98] sm:$0xff]
              %432 = vst [vmem:[%s404 + $0x98] sm:$0xff] %v431
              %v433 = vld [vmem:[%s403 + $0xa8] sm:$0xff]
              %434 = vst [vmem:[%s404 + $0xa8] sm:$0xff] %v433
              %v435 = vld [vmem:[%s403 + $0xb0] sm:$0xff]
              %436 = vst [vmem:[%s404 + $0xb0] sm:$0xff] %v435
              %v437 = vld [vmem:[%s403 + $0xc0] sm:$0xff]
              %438 = vst [vmem:[%s404 + $0xc0] sm:$0xff] %v437
              %v439 = vld [vmem:[%s403 + $0xc8] sm:$0xff]
              %440 = vst [vmem:[%s404 + $0xc8] sm:$0xff] %v439
              %v441 = vld [vmem:[%s403 + $0xd8] sm:$0xff]
              %442 = vst [vmem:[%s404 + $0xd8] sm:$0xff] %v441
              %v443 = vld [vmem:[%s403 + $0xe0] sm:$0xff]
              %444 = vst [vmem:[%s404 + $0xe0] sm:$0xff] %v443
            $region93: #{conv_bn_relu.2} parent=87 // loop_footer
              %s402 = sadd.s32 1, %s398
            $region94: #{conv_bn_relu.2} parent=87 // loop_footer_branch
              %397 = sbr.rel target = $region90
            $region95: #{conv_bn_relu.2} parent=87 // loop_exit
              _
            %s445 = sshllo.u32 0, %s392
            loop: start=0, step=1, limit=1
            $region96: #{conv_bn_relu.2} parent=87 // loop_pre_header
              _
            $region97: #{conv_bn_relu.2} parent=87 // loop_header
              %s447 = sphi 0, %s451
              %p448 = scmp.ge.s32.totalorder %s447, 1
              %s452 = sphi %s394, %s394
              %s453 = sphi %s396, %s396
            $region98: #{conv_bn_relu.2} parent=87 // loop_header_branch
              %450 = sbr.rel (%p448) target = $region102
            $region99: #{conv_bn_relu.2} parent=87 // loop_body
              %v454 = vld [vmem:[%s452] sm:%s445]
              %455 = vst [vmem:[%s453] sm:%s445] %v454
              %v456 = vld [vmem:[%s452 + $0x18] sm:%s445]
              %457 = vst [vmem:[%s453 + $0x18] sm:%s445] %v456
              %v458 = vld [vmem:[%s452 + $0x30] sm:%s445]
              %459 = vst [vmem:[%s453 + $0x30] sm:%s445] %v458
              %v460 = vld [vmem:[%s452 + $0x48] sm:%s445]
              %461 = vst [vmem:[%s453 + $0x48] sm:%s445] %v460
              %v462 = vld [vmem:[%s452 + $0x60] sm:%s445]
              %463 = vst [vmem:[%s453 + $0x60] sm:%s445] %v462
              %v464 = vld [vmem:[%s452 + $0x78] sm:%s445]
              %465 = vst [vmem:[%s453 + $0x78] sm:%s445] %v464
              %v466 = vld [vmem:[%s452 + $0x90] sm:%s445]
              %467 = vst [vmem:[%s453 + $0x90] sm:%s445] %v466
              %v468 = vld [vmem:[%s452 + $0xa8] sm:%s445]
              %469 = vst [vmem:[%s453 + $0xa8] sm:%s445] %v468
              %v470 = vld [vmem:[%s452 + $0xc0] sm:%s445]
              %471 = vst [vmem:[%s453 + $0xc0] sm:%s445] %v470
              %v472 = vld [vmem:[%s452 + $0xd8] sm:%s445]
              %473 = vst [vmem:[%s453 + $0xd8] sm:%s445] %v472
            $region100: #{conv_bn_relu.2} parent=87 // loop_footer
              %s451 = sadd.s32 1, %s447
            $region101: #{conv_bn_relu.2} parent=87 // loop_footer_branch
              %446 = sbr.rel target = $region97
            $region102: #{conv_bn_relu.2} parent=87 // loop_exit
              _
          $region88: #{conv_bn_relu.2} parent=72 // pred_fallthru
            _
        $region73: #{conv_bn_relu.2} parent=68 // pred_fallthru
          _
        // Predicated region
        $region74: #{conv_bn_relu.2} parent=68 // pred_check
          %p355 = pneg %p351
        $region75: #{conv_bn_relu.2} parent=68 // pred_check_branch
          %357 = sbr.rel (%p355) target = $region77
        $region76: #{conv_bn_relu.2} parent=68 // pred_region
          %s358 = sshllo.u32 0, 18
          loop: start=0, step=1, limit=1
          $region78: #{conv_bn_relu.2} parent=76 // loop_pre_header
            _
          $region79: #{conv_bn_relu.2} parent=76 // loop_header
            %s360 = sphi 0, %s364
            %p361 = scmp.ge.s32.totalorder %s360, 1
            %s365 = sphi %s346, %s346
            %s366 = sphi %s348, %s348
          $region80: #{conv_bn_relu.2} parent=76 // loop_header_branch
            %363 = sbr.rel (%p361) target = $region84
          $region81: #{conv_bn_relu.2} parent=76 // loop_body
            %v367 = vld [vmem:[%s365] sm:%s358]
            %368 = vst [vmem:[%s366] sm:%s358] %v367
            %v369 = vld [vmem:[%s365 + $0x18] sm:%s358]
            %370 = vst [vmem:[%s366 + $0x18] sm:%s358] %v369
            %v371 = vld [vmem:[%s365 + $0x30] sm:%s358]
            %372 = vst [vmem:[%s366 + $0x30] sm:%s358] %v371
            %v373 = vld [vmem:[%s365 + $0x48] sm:%s358]
            %374 = vst [vmem:[%s366 + $0x48] sm:%s358] %v373
            %v375 = vld [vmem:[%s365 + $0x60] sm:%s358]
            %376 = vst [vmem:[%s366 + $0x60] sm:%s358] %v375
            %v377 = vld [vmem:[%s365 + $0x78] sm:%s358]
            %378 = vst [vmem:[%s366 + $0x78] sm:%s358] %v377
            %v379 = vld [vmem:[%s365 + $0x90] sm:%s358]
            %380 = vst [vmem:[%s366 + $0x90] sm:%s358] %v379
            %v381 = vld [vmem:[%s365 + $0xa8] sm:%s358]
            %382 = vst [vmem:[%s366 + $0xa8] sm:%s358] %v381
            %v383 = vld [vmem:[%s365 + $0xc0] sm:%s358]
            %384 = vst [vmem:[%s366 + $0xc0] sm:%s358] %v383
            %v385 = vld [vmem:[%s365 + $0xd8] sm:%s358]
            %386 = vst [vmem:[%s366 + $0xd8] sm:%s358] %v385
          $region82: #{conv_bn_relu.2} parent=76 // loop_footer
            %s364 = sadd.s32 1, %s360
          $region83: #{conv_bn_relu.2} parent=76 // loop_footer_branch
            %359 = sbr.rel target = $region79
          $region84: #{conv_bn_relu.2} parent=76 // loop_exit
            _
        $region77: #{conv_bn_relu.2} parent=68 // pred_fallthru
          _
        // Predicated region
        $region103: #{conv_bn_relu.2} parent=68 // pred_check
          _
        $region104: #{conv_bn_relu.2} parent=68 // pred_check_branch
          %476 = sbr.rel (0) target = $region106
        $region105: #{conv_bn_relu.2} parent=68 // pred_region
          %477 = vsyncadd %s349, 2880
        $region106: #{conv_bn_relu.2} parent=68 // pred_fallthru
          _
      $region69: #{conv_bn_relu.2} parent=23 // pred_fallthru
        _
      %v478 = vld [vmem:[%s330] sm:$0xff]
      %v479 = vld [vmem:[%s330 + $0x8] sm:$0xff]
      %v480 = vld [vmem:[%s330 + $0x10] sm:$0x3]
      %v481 = vld [vmem:[%s330 + $0x18] sm:$0xff]
      %v482 = vld [vmem:[%s330 + $0x20] sm:$0xff]
      %v483 = vld [vmem:[%s330 + $0x28] sm:$0x3]
      %v484 = vld [vmem:[%s330 + $0x30] sm:$0xff]
      %v485 = vld [vmem:[%s330 + $0x38] sm:$0xff]
      %v486 = vld [vmem:[%s330 + $0x40] sm:$0x3]
      %v487 = vld [vmem:[%s330 + $0x48] sm:$0xff]
      %v488 = vld [vmem:[%s330 + $0x50] sm:$0xff]
      %v489 = vld [vmem:[%s330 + $0x58] sm:$0x3]
      %v490 = vld [vmem:[%s330 + $0x60] sm:$0xff]
      %v491 = vld [vmem:[%s330 + $0x68] sm:$0xff]
      %v492 = vld [vmem:[%s330 + $0x70] sm:$0x3]
      %v493 = vld [vmem:[%s330 + $0x78] sm:$0xff]
      %v494 = vld [vmem:[%s330 + $0x80] sm:$0xff]
      %v495 = vld [vmem:[%s330 + $0x88] sm:$0x3]
      %v496 = vld [vmem:[%s330 + $0x90] sm:$0xff]
      %v497 = vld [vmem:[%s330 + $0x98] sm:$0xff]
      %v498 = vld [vmem:[%s330 + $0xa0] sm:$0x3]
      %v499 = vld [vmem:[%s330 + $0xa8] sm:$0xff]
      %v500 = vld [vmem:[%s330 + $0xb0] sm:$0xff]
      %v501 = vld [vmem:[%s330 + $0xb8] sm:$0x3]
      %v502 = vld [vmem:[%s330 + $0xc0] sm:$0xff]
      %v503 = vld [vmem:[%s330 + $0xc8] sm:$0xff]
      %v504 = vld [vmem:[%s330 + $0xd0] sm:$0x3]
      %v505 = vld [vmem:[%s330 + $0xd8] sm:$0xff]
      %v506 = vld [vmem:[%s330 + $0xe0] sm:$0xff]
      %v507 = vld [vmem:[%s330 + $0xe8] sm:$0x3]
      %vm532 = vcmask 1046528
      %v533 = vrot.slane %v478, 1
      %v534 = vrot.slane %v479, 1
      %v535 = vsel %vm532, %v533, %v534
      %v536 = vrot.slane %v480, 1
      %v537 = vsel %vm532, %v534, %v536
      %v538 = vrot.slane %v481, 1
      %v539 = vrot.slane %v482, 1
      %v540 = vsel %vm532, %v538, %v539
      %v541 = vrot.slane %v483, 1
      %v542 = vsel %vm532, %v539, %v541
      %v543 = vrot.slane %v484, 1
      %v544 = vrot.slane %v485, 1
      %v545 = vsel %vm532, %v543, %v544
      %v546 = vrot.slane %v486, 1
      %v547 = vsel %vm532, %v544, %v546
      %v548 = vrot.slane %v487, 1
      %v549 = vrot.slane %v488, 1
      %v550 = vsel %vm532, %v548, %v549
      %v551 = vrot.slane %v489, 1
      %v552 = vsel %vm532, %v549, %v551
      %v553 = vrot.slane %v490, 1
      %v554 = vrot.slane %v491, 1
      %v555 = vsel %vm532, %v553, %v554
      %v556 = vrot.slane %v492, 1
      %v557 = vsel %vm532, %v554, %v556
      %v558 = vrot.slane %v493, 1
      %v559 = vrot.slane %v494, 1
      %v560 = vsel %vm532, %v558, %v559
      %v561 = vrot.slane %v495, 1
      %v562 = vsel %vm532, %v559, %v561
      %v563 = vrot.slane %v496, 1
      %v564 = vrot.slane %v497, 1
      %v565 = vsel %vm532, %v563, %v564
      %v566 = vrot.slane %v498, 1
      %v567 = vsel %vm532, %v564, %v566
      %v568 = vrot.slane %v499, 1
      %v569 = vrot.slane %v500, 1
      %v570 = vsel %vm532, %v568, %v569
      %v571 = vrot.slane %v501, 1
      %v572 = vsel %vm532, %v569, %v571
      %vm589 = vcmask 1045504
      %v590 = vrot.slane %v478, 2
      %v591 = vrot.slane %v479, 2
      %v592 = vsel %vm589, %v590, %v591
      %v593 = vrot.slane %v480, 2
      %v594 = vsel %vm589, %v591, %v593
      %v595 = vrot.slane %v481, 2
      %v596 = vrot.slane %v482, 2
      %v597 = vsel %vm589, %v595, %v596
      %v598 = vrot.slane %v483, 2
      %v599 = vsel %vm589, %v596, %v598
      %v600 = vrot.slane %v484, 2
      %v601 = vrot.slane %v485, 2
      %v602 = vsel %vm589, %v600, %v601
      %v603 = vrot.slane %v486, 2
      %v604 = vsel %vm589, %v601, %v603
      %v605 = vrot.slane %v487, 2
      %v606 = vrot.slane %v488, 2
      %v607 = vsel %vm589, %v605, %v606
      %v608 = vrot.slane %v489, 2
      %v609 = vsel %vm589, %v606, %v608
      %v610 = vrot.slane %v490, 2
      %v611 = vrot.slane %v491, 2
      %v612 = vsel %vm589, %v610, %v611
      %v613 = vrot.slane %v492, 2
      %v614 = vsel %vm589, %v611, %v613
      %v615 = vrot.slane %v493, 2
      %v616 = vrot.slane %v494, 2
      %v617 = vsel %vm589, %v615, %v616
      %v618 = vrot.slane %v495, 2
      %v619 = vsel %vm589, %v616, %v618
      %v620 = vrot.slane %v496, 2
      %v621 = vrot.slane %v497, 2
      %v622 = vsel %vm589, %v620, %v621
      %v623 = vrot.slane %v498, 2
      %v624 = vsel %vm589, %v621, %v623
      %v625 = vrot.slane %v499, 2
      %v626 = vrot.slane %v500, 2
      %v627 = vsel %vm589, %v625, %v626
      %v628 = vrot.slane %v501, 2
      %v629 = vsel %vm589, %v626, %v628
      %v649 = vrot.slane %v502, 1
      %v650 = vrot.slane %v503, 1
      %v651 = vsel %vm532, %v649, %v650
      %v652 = vrot.slane %v504, 1
      %v653 = vsel %vm532, %v650, %v652
      %v656 = vrot.slane %v502, 2
      %v657 = vrot.slane %v503, 2
      %v658 = vsel %vm589, %v656, %v657
      %v659 = vrot.slane %v504, 2
      %v660 = vsel %vm589, %v657, %v659
      %v666 = vrot.slane %v505, 1
      %v667 = vrot.slane %v506, 1
      %v668 = vsel %vm532, %v666, %v667
      %v669 = vrot.slane %v507, 1
      %v670 = vsel %vm532, %v667, %v669
      %v673 = vrot.slane %v505, 2
      %v674 = vrot.slane %v506, 2
      %v675 = vsel %vm589, %v673, %v674
      %v676 = vrot.slane %v507, 2
      %v677 = vsel %vm589, %v674, %v676
      %v680 = vld [vmem:[%s1] sm:$0xff]
      %v681 = vld [vmem:[%s1 + $0x8] sm:$0xff]
      %v682 = vld [vmem:[%s1 + $0x10] sm:$0xff]
      %v683 = vld [vmem:[%s1 + $0x18] sm:$0xff]
      %v684 = vld [vmem:[%s1 + $0x20] sm:$0xff]
      %v685 = vld [vmem:[%s1 + $0x28] sm:$0xff]
      %v686 = vld [vmem:[%s1 + $0x30] sm:$0xff]
      %v687 = vld [vmem:[%s1 + $0x38] sm:$0xff]
      %v688 = vld [vmem:[%s1 + $0x40] sm:$0xff]
      %v689 = vld [vmem:[%s1 + $0x48] sm:$0xff]
      %v690 = vld [vmem:[%s1 + $0x50] sm:$0xff]
      %v691 = vld [vmem:[%s1 + $0x58] sm:$0xff]
      %v692 = vld [vmem:[%s1 + $0x60] sm:$0xff]
      %v693 = vld [vmem:[%s1 + $0x68] sm:$0xff]
      %v694 = vld [vmem:[%s1 + $0x70] sm:$0xff]
      %v695 = vld [vmem:[%s1 + $0x78] sm:$0xff]
      %v696 = vld [vmem:[%s1 + $0x80] sm:$0xff]
      %v697 = vld [vmem:[%s1 + $0x88] sm:$0xff]
      %v698 = vld [vmem:[%s1 + $0x90] sm:$0xff]
      %v699 = vld [vmem:[%s1 + $0x98] sm:$0xff]
      %v700 = vld [vmem:[%s1 + $0xa0] sm:$0xff]
      %v701 = vld [vmem:[%s1 + $0xa8] sm:$0xff]
      %v702 = vld [vmem:[%s1 + $0xb0] sm:$0xff]
      %v703 = vld [vmem:[%s1 + $0xb8] sm:$0xff]
      %v704 = vld [vmem:[%s1 + $0xc0] sm:$0xff]
      %v705 = vld [vmem:[%s1 + $0xc8] sm:$0xff]
      %v706 = vld [vmem:[%s1 + $0xd0] sm:$0xff]
      %v707 = vld [vmem:[%s1 + $0xd8] sm:$0xff]
      %v708 = vld [vmem:[%s1 + $0xe0] sm:$0xff]
      %v709 = vld [vmem:[%s1 + $0xe8] sm:$0xff]
      %v710 = vld [vmem:[%s1 + $0xf0] sm:$0xff]
      %v711 = vld [vmem:[%s1 + $0xf8] sm:$0xff]
      %v712 = vld [vmem:[%s1 + $0x100] sm:$0xff]
      %v713 = vld [vmem:[%s1 + $0x108] sm:$0xff]
      %v714 = vld [vmem:[%s1 + $0x110] sm:$0xff]
      %v715 = vld [vmem:[%s1 + $0x118] sm:$0xff]
      %v716 = vld [vmem:[%s1 + $0x120] sm:$0xff]
      %v717 = vld [vmem:[%s1 + $0x128] sm:$0xff]
      %v718 = vld [vmem:[%s1 + $0x130] sm:$0xff]
      %v719 = vld [vmem:[%s1 + $0x138] sm:$0xff]
      %v720 = vld [vmem:[%s1 + $0x140] sm:$0xff]
      %v721 = vld [vmem:[%s1 + $0x148] sm:$0xff]
      %v722 = vld [vmem:[%s1 + $0x150] sm:$0xff]
      %v723 = vld [vmem:[%s1 + $0x158] sm:$0xff]
      %v724 = vld [vmem:[%s1 + $0x160] sm:$0xff]
      %v725 = vld [vmem:[%s1 + $0x168] sm:$0xff]
      %v726 = vld [vmem:[%s1 + $0x170] sm:$0xff]
      %v727 = vld [vmem:[%s1 + $0x178] sm:$0xff]
      %v728 = vld [vmem:[%s1 + $0x180] sm:$0xff]
      %v729 = vld [vmem:[%s1 + $0x188] sm:$0xff]
      %v730 = vld [vmem:[%s1 + $0x190] sm:$0xff]
      %v731 = vld [vmem:[%s1 + $0x198] sm:$0xff]
      %v732 = vld [vmem:[%s1 + $0x1a0] sm:$0xff]
      %v733 = vld [vmem:[%s1 + $0x1a8] sm:$0xff]
      %v734 = vld [vmem:[%s1 + $0x1b0] sm:$0xff]
      %v735 = vld [vmem:[%s1 + $0x1b8] sm:$0xff]
      %v736 = vld [vmem:[%s1 + $0x1c0] sm:$0xff]
      %v737 = vld [vmem:[%s1 + $0x1c8] sm:$0xff]
      %v738 = vld [vmem:[%s1 + $0x1d0] sm:$0xff]
      %v739 = vld [vmem:[%s1 + $0x1d8] sm:$0xff]
      %v740 = vld [vmem:[%s1 + $0x1e0] sm:$0xff]
      %v741 = vld [vmem:[%s1 + $0x1e8] sm:$0xff]
      %v742 = vld [vmem:[%s1 + $0x1f0] sm:$0xff]
      %v743 = vld [vmem:[%s1 + $0x1f8] sm:$0xff]
      %v744 = vld [vmem:[%s1 + $0x200] sm:$0xff]
      %v745 = vld [vmem:[%s1 + $0x208] sm:$0xff]
      %v746 = vld [vmem:[%s1 + $0x210] sm:$0xff]
      %v747 = vld [vmem:[%s1 + $0x218] sm:$0xff]
      %v748 = vld [vmem:[%s1 + $0x220] sm:$0xff]
      %v749 = vld [vmem:[%s1 + $0x228] sm:$0xff]
      %v750 = vld [vmem:[%s1 + $0x230] sm:$0xff]
      %v751 = vld [vmem:[%s1 + $0x238] sm:$0xff]
      %v752 = vld [vmem:[%s1 + $0x240] sm:$0xff]
      %v753 = vld [vmem:[%s1 + $0x248] sm:$0xff]
      %v754 = vld [vmem:[%s1 + $0x250] sm:$0xff]
      %v755 = vld [vmem:[%s1 + $0x258] sm:$0xff]
      %v756 = vld [vmem:[%s1 + $0x260] sm:$0xff]
      %v757 = vld [vmem:[%s1 + $0x268] sm:$0xff]
      %v758 = vld [vmem:[%s1 + $0x270] sm:$0xff]
      %v759 = vld [vmem:[%s1 + $0x278] sm:$0xff]
      %v760 = vld [vmem:[%s1 + $0x280] sm:$0xff]
      %v761 = vld [vmem:[%s1 + $0x288] sm:$0xff]
      %v762 = vld [vmem:[%s1 + $0x290] sm:$0xff]
      %v763 = vld [vmem:[%s1 + $0x298] sm:$0xff]
      %v764 = vld [vmem:[%s1 + $0x2a0] sm:$0xff]
      %v765 = vld [vmem:[%s1 + $0x2a8] sm:$0xff]
      %v766 = vld [vmem:[%s1 + $0x2b0] sm:$0xff]
      %v767 = vld [vmem:[%s1 + $0x2b8] sm:$0xff]
      %v768 = vld [vmem:[%s1 + $0x2c0] sm:$0xff]
      %v769 = vld [vmem:[%s1 + $0x2c8] sm:$0xff]
      %v770 = vld [vmem:[%s1 + $0x2d0] sm:$0xff]
      %v771 = vld [vmem:[%s1 + $0x2d8] sm:$0xff]
      %v772 = vld [vmem:[%s1 + $0x2e0] sm:$0xff]
      %v773 = vld [vmem:[%s1 + $0x2e8] sm:$0xff]
      %v774 = vld [vmem:[%s1 + $0x2f0] sm:$0xff]
      %v775 = vld [vmem:[%s1 + $0x2f8] sm:$0xff]
      %v776 = vld [vmem:[%s1 + $0x300] sm:$0xff]
      %v777 = vld [vmem:[%s1 + $0x308] sm:$0xff]
      %v778 = vld [vmem:[%s1 + $0x310] sm:$0xff]
      %v779 = vld [vmem:[%s1 + $0x318] sm:$0xff]
      %v780 = vld [vmem:[%s1 + $0x320] sm:$0xff]
      %v781 = vld [vmem:[%s1 + $0x328] sm:$0xff]
      %v782 = vld [vmem:[%s1 + $0x330] sm:$0xff]
      %v783 = vld [vmem:[%s1 + $0x338] sm:$0xff]
      %v784 = vld [vmem:[%s1 + $0x340] sm:$0xff]
      %v785 = vld [vmem:[%s1 + $0x348] sm:$0xff]
      %v786 = vld [vmem:[%s1 + $0x350] sm:$0xff]
      %v787 = vld [vmem:[%s1 + $0x358] sm:$0xff]
      %v788 = vld [vmem:[%s1 + $0x360] sm:$0xff]
      %v789 = vld [vmem:[%s1 + $0x368] sm:$0xff]
      %v790 = vld [vmem:[%s1 + $0x370] sm:$0xff]
      %v791 = vld [vmem:[%s1 + $0x378] sm:$0xff]
      %v792 = vld [vmem:[%s1 + $0x380] sm:$0xff]
      %v793 = vld [vmem:[%s1 + $0x388] sm:$0xff]
      %v794 = vld [vmem:[%s1 + $0x390] sm:$0xff]
      %v795 = vld [vmem:[%s1 + $0x398] sm:$0xff]
      %v796 = vld [vmem:[%s1 + $0x3a0] sm:$0xff]
      %v797 = vld [vmem:[%s1 + $0x3a8] sm:$0xff]
      %v798 = vld [vmem:[%s1 + $0x3b0] sm:$0xff]
      %v799 = vld [vmem:[%s1 + $0x3b8] sm:$0xff]
      %v800 = vld [vmem:[%s1 + $0x3c0] sm:$0xff]
      %v801 = vld [vmem:[%s1 + $0x3c8] sm:$0xff]
      %v802 = vld [vmem:[%s1 + $0x3d0] sm:$0xff]
      %v803 = vld [vmem:[%s1 + $0x3d8] sm:$0xff]
      %v804 = vld [vmem:[%s1 + $0x3e0] sm:$0xff]
      %v805 = vld [vmem:[%s1 + $0x3e8] sm:$0xff]
      %v806 = vld [vmem:[%s1 + $0x3f0] sm:$0xff]
      %v807 = vld [vmem:[%s1 + $0x3f8] sm:$0xff]
      %v808 = vld [vmem:[%s1 + $0x400] sm:$0xff]
      %v809 = vld [vmem:[%s1 + $0x408] sm:$0xff]
      %v810 = vld [vmem:[%s1 + $0x410] sm:$0xff]
      %v811 = vld [vmem:[%s1 + $0x418] sm:$0xff]
      %v812 = vld [vmem:[%s1 + $0x420] sm:$0xff]
      %v813 = vld [vmem:[%s1 + $0x428] sm:$0xff]
      %v814 = vld [vmem:[%s1 + $0x430] sm:$0xff]
      %v815 = vld [vmem:[%s1 + $0x438] sm:$0xff]
      %v816 = vld [vmem:[%s1 + $0x440] sm:$0xff]
      %v817 = vld [vmem:[%s1 + $0x448] sm:$0xff]
      %v818 = vld [vmem:[%s1 + $0x450] sm:$0xff]
      %v819 = vld [vmem:[%s1 + $0x458] sm:$0xff]
      %v820 = vld [vmem:[%s1 + $0x460] sm:$0xff]
      %v821 = vld [vmem:[%s1 + $0x468] sm:$0xff]
      %v822 = vld [vmem:[%s1 + $0x470] sm:$0xff]
      %v823 = vld [vmem:[%s1 + $0x478] sm:$0xff]
      %824 = vmatprep.subr.mxu0 0.0
      %825 = vmatpush1.msra.mxu0 %v680
      %826 = vmatprep.subr.mxu0 0.0
      %827 = vmatpush1.msra.mxu0 %v681
      %828 = vmatprep.subr.mxu0 0.0
      %829 = vmatpush1.msra.mxu0 %v682
      %830 = vmatprep.subr.mxu0 0.0
      %831 = vmatpush1.msra.mxu0 %v683
      %832 = vmatprep.subr.mxu0 0.0
      %833 = vmatpush1.msra.mxu0 %v684
      %834 = vmatprep.subr.mxu0 0.0
      %835 = vmatpush1.msra.mxu0 %v685
      %836 = vmatprep.subr.mxu0 0.0
      %837 = vmatpush1.msra.mxu0 %v686
      %838 = vmatprep.subr.mxu0 0.0
      %839 = vmatpush1.msra.mxu0 %v687
      %840 = vmatprep.subr.mxu0 0.0
      %841 = vmatpush1.msra.mxu0 %v688
      %842 = vmatprep.subr.mxu0 0.0
      %843 = vmatpush1.msra.mxu0 %v689
      %844 = vmatprep.subr.mxu0 0.0
      %845 = vmatpush1.msra.mxu0 %v690
      %846 = vmatprep.subr.mxu0 0.0
      %847 = vmatpush1.msra.mxu0 %v691
      %848 = vmatprep.subr.mxu0 0.0
      %849 = vmatpush1.msra.mxu0 %v692
      %850 = vmatprep.subr.mxu0 0.0
      %851 = vmatpush1.msra.mxu0 %v693
      %852 = vmatprep.subr.mxu0 0.0
      %853 = vmatpush1.msra.mxu0 %v694
      %854 = vmatprep.subr.mxu0 0.0
      %855 = vmatpush1.msra.mxu0 %v695
      %856 = vmatprep.subr.mxu0 0.0
      %857 = vmatpush1.msra.mxu0 %v696
      %858 = vmatprep.subr.mxu0 0.0
      %859 = vmatpush1.msra.mxu0 %v697
      %860 = vmatprep.subr.mxu0 0.0
      %861 = vmatpush1.msra.mxu0 %v698
      %862 = vmatprep.subr.mxu0 0.0
      %863 = vmatpush1.msra.mxu0 %v699
      %864 = vmatprep.subr.mxu0 0.0
      %865 = vmatpush1.msra.mxu0 %v700
      %866 = vmatprep.subr.mxu0 0.0
      %867 = vmatpush1.msra.mxu0 %v701
      %868 = vmatprep.subr.mxu0 0.0
      %869 = vmatpush1.msra.mxu0 %v702
      %870 = vmatprep.subr.mxu0 0.0
      %871 = vmatpush1.msra.mxu0 %v703
      %872 = vmatprep.subr.mxu0 0.0
      %873 = vmatpush1.msra.mxu0 %v704
      %874 = vmatprep.subr.mxu0 0.0
      %875 = vmatpush1.msra.mxu0 %v705
      %876 = vmatprep.subr.mxu0 0.0
      %877 = vmatpush1.msra.mxu0 %v706
      %878 = vmatprep.subr.mxu0 0.0
      %879 = vmatpush1.msra.mxu0 %v707
      %880 = vmatprep.subr.mxu0 0.0
      %881 = vmatpush1.msra.mxu0 %v708
      %882 = vmatprep.subr.mxu0 0.0
      %883 = vmatpush1.msra.mxu0 %v709
      %884 = vmatprep.subr.mxu0 0.0
      %885 = vmatpush1.msra.mxu0 %v710
      %886 = vmatprep.subr.mxu0 0.0
      %887 = vmatpush1.msra.mxu0 %v711
      %888 = vmatprep.mubr.f32.mxu0 %v535
      %889 = vmatmul.mubr.f32.gmra.mrb[0].mxu0 %v478
      %v890 = vpop.f32.mrb[0].mxu0
      %v891 = vadd.f32 0.0, %v890
      %v892 = vpop.f32.mrb[0].mxu0
      %893 = vmatprep.mubr.f32.mxu0 %v537
      %894 = vmatmul.mubr.f32.gmra.mrb[0].mxu0 %v479
      %v895 = vpop.f32.mrb[0].mxu0
      %v896 = vadd.f32 0.0, %v895
      %v897 = vpop.f32.mrb[0].mxu0
      %898 = vmatprep.mubr.f32.mxu0 %v540
      %899 = vmatmul.mubr.f32.gmra.mrb[0].mxu0 %v481
      %v900 = vpop.f32.mrb[0].mxu0
      %v901 = vadd.f32 0.0, %v900
      %v902 = vpop.f32.mrb[0].mxu0
      %903 = vmatprep.mubr.f32.mxu0 %v542
      %904 = vmatmul.mubr.f32.gmra.mrb[0].mxu0 %v482
      %v905 = vpop.f32.mrb[0].mxu0
      %v906 = vadd.f32 0.0, %v905
      %v907 = vpop.f32.mrb[0].mxu0
      %908 = vmatprep.mubr.f32.mxu0 %v545
      %909 = vmatmul.mubr.f32.gmra.mrb[0].mxu0 %v484
      %v910 = vpop.f32.mrb[0].mxu0
      %v911 = vadd.f32 0.0, %v910
      %v912 = vpop.f32.mrb[0].mxu0
      %913 = vmatprep.mubr.f32.mxu0 %v547
      %914 = vmatmul.mubr.f32.gmra.mrb[0].mxu0 %v485
      %v915 = vpop.f32.mrb[0].mxu0
      %v916 = vadd.f32 0.0, %v915
      %v917 = vpop.f32.mrb[0].mxu0
      %918 = vmatprep.mubr.f32.mxu0 %v550
      %919 = vmatmul.mubr.f32.gmra.mrb[0].mxu0 %v487
      %v920 = vpop.f32.mrb[0].mxu0
      %v921 = vadd.f32 0.0, %v920
      %v922 = vpop.f32.mrb[0].mxu0
      %923 = vmatprep.mubr.f32.mxu0 %v552
      %924 = vmatmul.mubr.f32.gmra.mrb[0].mxu0 %v488
      %v925 = vpop.f32.mrb[0].mxu0
      %v926 = vadd.f32 0.0, %v925
      %v927 = vpop.f32.mrb[0].mxu0
      %928 = vmatprep.mubr.f32.mxu0 %v555
      %929 = vmatmul.mubr.f32.gmra.mrb[0].mxu0 %v490
      %v930 = vpop.f32.mrb[0].mxu0
      %v931 = vadd.f32 0.0, %v930
      %v932 = vpop.f32.mrb[0].mxu0
      %933 = vmatprep.mubr.f32.mxu0 %v557
      %934 = vmatmul.mubr.f32.gmra.mrb[0].mxu0 %v491
      %v935 = vpop.f32.mrb[0].mxu0
      %v936 = vadd.f32 0.0, %v935
      %v937 = vpop.f32.mrb[0].mxu0
      %938 = vmatprep.mubr.f32.mxu0 %v560
      %939 = vmatmul.mubr.f32.gmra.mrb[0].mxu0 %v493
      %v940 = vpop.f32.mrb[0].mxu0
      %v941 = vadd.f32 0.0, %v940
      %v942 = vpop.f32.mrb[0].mxu0
      %943 = vmatprep.mubr.f32.mxu0 %v562
      %944 = vmatmul.mubr.f32.gmra.mrb[0].mxu0 %v494
      %v945 = vpop.f32.mrb[0].mxu0
      %v946 = vadd.f32 0.0, %v945
      %v947 = vpop.f32.mrb[0].mxu0
      %948 = vmatprep.mubr.f32.mxu0 %v565
      %949 = vmatmul.mubr.f32.gmra.mrb[0].mxu0 %v496
      %v950 = vpop.f32.mrb[0].mxu0
      %v951 = vadd.f32 0.0, %v950
      %v952 = vpop.f32.mrb[0].mxu0
      %953 = vmatprep.mubr.f32.mxu0 %v567
      %954 = vmatmul.mubr.f32.gmra.mrb[0].mxu0 %v497
      %v955 = vpop.f32.mrb[0].mxu0
      %v956 = vadd.f32 0.0, %v955
      %v957 = vpop.f32.mrb[0].mxu0
      %958 = vmatprep.mubr.f32.mxu0 %v570
      %959 = vmatmul.mubr.f32.gmra.mrb[0].mxu0 %v499
      %v960 = vpop.f32.mrb[0].mxu0
      %v961 = vadd.f32 0.0, %v960
      %v962 = vpop.f32.mrb[0].mxu0
      %963 = vmatprep.mubr.f32.mxu0 %v572
      %964 = vmatmul.mubr.f32.gmra.mrb[0].mxu0 %v500
      %v965 = vpop.f32.mrb[0].mxu0
      %v966 = vadd.f32 0.0, %v965
      %v967 = vpop.f32.mrb[0].mxu0
      %968 = vdwg.mxu0
      %969 = vmatprep.subr.mxu0 0.0
      %970 = vmatpush1.msra.mxu0 %v712
      %971 = vmatprep.subr.mxu0 0.0
      %972 = vmatpush1.msra.mxu0 %v713
      %973 = vmatprep.subr.mxu0 0.0
      %974 = vmatpush1.msra.mxu0 %v714
      %975 = vmatprep.subr.mxu0 0.0
      %976 = vmatpush1.msra.mxu0 %v715
      %977 = vmatprep.subr.mxu0 0.0
      %978 = vmatpush1.msra.mxu0 %v716
      %979 = vmatprep.subr.mxu0 0.0
      %980 = vmatpush1.msra.mxu0 %v717
      %981 = vmatprep.subr.mxu0 0.0
      %982 = vmatpush1.msra.mxu0 %v718
      %983 = vmatprep.subr.mxu0 0.0
      %984 = vmatpush1.msra.mxu0 %v719
      %985 = vmatprep.subr.mxu0 0.0
      %986 = vmatpush1.msra.mxu0 %v720
      %987 = vmatprep.subr.mxu0 0.0
      %988 = vmatpush1.msra.mxu0 %v721
      %989 = vmatprep.subr.mxu0 0.0
      %990 = vmatpush1.msra.mxu0 %v722
      %991 = vmatprep.subr.mxu0 0.0
      %992 = vmatpush1.msra.mxu0 %v723
      %993 = vmatprep.subr.mxu0 0.0
      %994 = vmatpush1.msra.mxu0 %v724
      %995 = vmatprep.subr.mxu0 0.0
      %996 = vmatpush1.msra.mxu0 %v725
      %997 = vmatprep.subr.mxu0 0.0
      %998 = vmatpush1.msra.mxu0 %v726
      %999 = vmatprep.subr.mxu0 0.0
      %1000 = vmatpush1.msra.mxu0 %v727
      %1001 = vmatprep.subr.mxu0 0.0
      %1002 = vmatpush1.msra.mxu0 %v728
      %1003 = vmatprep.subr.mxu0 0.0
      %1004 = vmatpush1.msra.mxu0 %v729
      %1005 = vmatprep.subr.mxu0 0.0
      %1006 = vmatpush1.msra.mxu0 %v730
      %1007 = vmatprep.subr.mxu0 0.0
      %1008 = vmatpush1.msra.mxu0 %v731
      %1009 = vmatprep.subr.mxu0 0.0
      %1010 = vmatpush1.msra.mxu0 %v732
      %1011 = vmatprep.subr.mxu0 0.0
      %1012 = vmatpush1.msra.mxu0 %v733
      %1013 = vmatprep.subr.mxu0 0.0
      %1014 = vmatpush1.msra.mxu0 %v734
      %1015 = vmatprep.subr.mxu0 0.0
      %1016 = vmatpush1.msra.mxu0 %v735
      %1017 = vmatprep.subr.mxu0 0.0
      %1018 = vmatpush1.msra.mxu0 %v736
      %1019 = vmatprep.subr.mxu0 0.0
      %1020 = vmatpush1.msra.mxu0 %v737
      %1021 = vmatprep.subr.mxu0 0.0
      %1022 = vmatpush1.msra.mxu0 %v738
      %1023 = vmatprep.subr.mxu0 0.0
      %1024 = vmatpush1.msra.mxu0 %v739
      %1025 = vmatprep.subr.mxu0 0.0
      %1026 = vmatpush1.msra.mxu0 %v740
      %1027 = vmatprep.subr.mxu0 0.0
      %1028 = vmatpush1.msra.mxu0 %v741
      %1029 = vmatprep.subr.mxu0 0.0
      %1030 = vmatpush1.msra.mxu0 %v742
      %1031 = vmatprep.subr.mxu0 0.0
      %1032 = vmatpush1.msra.mxu0 %v743
      %1033 = vmatprep.mubr.f32.mxu0 %v481
      %1034 = vmatmul.mubr.f32.gmra.mrb[0].mxu0 %v592
      %v1035 = vpop.f32.mrb[0].mxu0
      %v1036 = vadd.f32 %v891, %v1035
      %v1037 = vpop.f32.mrb[0].mxu0
      %1038 = vmatprep.mubr.f32.mxu0 %v482
      %1039 = vmatmul.mubr.f32.gmra.mrb[0].mxu0 %v594
      %v1040 = vpop.f32.mrb[0].mxu0
      %v1041 = vadd.f32 %v896, %v1040
      %v1042 = vpop.f32.mrb[0].mxu0
      %1043 = vmatprep.mubr.f32.mxu0 %v484
      %1044 = vmatmul.mubr.f32.gmra.mrb[0].mxu0 %v597
      %v1045 = vpop.f32.mrb[0].mxu0
      %v1046 = vadd.f32 %v901, %v1045
      %v1047 = vpop.f32.mrb[0].mxu0
      %1048 = vmatprep.mubr.f32.mxu0 %v485
      %1049 = vmatmul.mubr.f32.gmra.mrb[0].mxu0 %v599
      %v1050 = vpop.f32.mrb[0].mxu0
      %v1051 = vadd.f32 %v906, %v1050
      %v1052 = vpop.f32.mrb[0].mxu0
      %1053 = vmatprep.mubr.f32.mxu0 %v487
      %1054 = vmatmul.mubr.f32.gmra.mrb[0].mxu0 %v602
      %v1055 = vpop.f32.mrb[0].mxu0
      %v1056 = vadd.f32 %v911, %v1055
      %v1057 = vpop.f32.mrb[0].mxu0
      %1058 = vmatprep.mubr.f32.mxu0 %v488
      %1059 = vmatmul.mubr.f32.gmra.mrb[0].mxu0 %v604
      %v1060 = vpop.f32.mrb[0].mxu0
      %v1061 = vadd.f32 %v916, %v1060
      %v1062 = vpop.f32.mrb[0].mxu0
      %1063 = vmatprep.mubr.f32.mxu0 %v490
      %1064 = vmatmul.mubr.f32.gmra.mrb[0].mxu0 %v607
      %v1065 = vpop.f32.mrb[0].mxu0
      %v1066 = vadd.f32 %v921, %v1065
      %v1067 = vpop.f32.mrb[0].mxu0
      %1068 = vmatprep.mubr.f32.mxu0 %v491
      %1069 = vmatmul.mubr.f32.gmra.mrb[0].mxu0 %v609
      %v1070 = vpop.f32.mrb[0].mxu0
      %v1071 = vadd.f32 %v926, %v1070
      %v1072 = vpop.f32.mrb[0].mxu0
      %1073 = vmatprep.mubr.f32.mxu0 %v493
      %1074 = vmatmul.mubr.f32.gmra.mrb[0].mxu0 %v612
      %v1075 = vpop.f32.mrb[0].mxu0
      %v1076 = vadd.f32 %v931, %v1075
      %v1077 = vpop.f32.mrb[0].mxu0
      %1078 = vmatprep.mubr.f32.mxu0 %v494
      %1079 = vmatmul.mubr.f32.gmra.mrb[0].mxu0 %v614
      %v1080 = vpop.f32.mrb[0].mxu0
      %v1081 = vadd.f32 %v936, %v1080
      %v1082 = vpop.f32.mrb[0].mxu0
      %1083 = vmatprep.mubr.f32.mxu0 %v496
      %1084 = vmatmul.mubr.f32.gmra.mrb[0].mxu0 %v617
      %v1085 = vpop.f32.mrb[0].mxu0
      %v1086 = vadd.f32 %v941, %v1085
      %v1087 = vpop.f32.mrb[0].mxu0
      %1088 = vmatprep.mubr.f32.mxu0 %v497
      %1089 = vmatmul.mubr.f32.gmra.mrb[0].mxu0 %v619
      %v1090 = vpop.f32.mrb[0].mxu0
      %v1091 = vadd.f32 %v946, %v1090
      %v1092 = vpop.f32.mrb[0].mxu0
      %1093 = vmatprep.mubr.f32.mxu0 %v499
      %1094 = vmatmul.mubr.f32.gmra.mrb[0].mxu0 %v622
      %v1095 = vpop.f32.mrb[0].mxu0
      %v1096 = vadd.f32 %v951, %v1095
      %v1097 = vpop.f32.mrb[0].mxu0
      %1098 = vmatprep.mubr.f32.mxu0 %v500
      %1099 = vmatmul.mubr.f32.gmra.mrb[0].mxu0 %v624
      %v1100 = vpop.f32.mrb[0].mxu0
      %v1101 = vadd.f32 %v956, %v1100
      %v1102 = vpop.f32.mrb[0].mxu0
      %1103 = vmatprep.mubr.f32.mxu0 %v502
      %1104 = vmatmul.mubr.f32.gmra.mrb[0].mxu0 %v627
      %v1105 = vpop.f32.mrb[0].mxu0
      %v1106 = vadd.f32 %v961, %v1105
      %v1107 = vpop.f32.mrb[0].mxu0
      %1108 = vmatprep.mubr.f32.mxu0 %v503
      %1109 = vmatmul.mubr.f32.gmra.mrb[0].mxu0 %v629
      %v1110 = vpop.f32.mrb[0].mxu0
      %v1111 = vadd.f32 %v966, %v1110
      %v1112 = vpop.f32.mrb[0].mxu0
      %1113 = vdwg.mxu0
      %1114 = vmatprep.subr.mxu0 0.0
      %1115 = vmatpush1.msra.mxu0 %v744
      %1116 = vmatprep.subr.mxu0 0.0
      %1117 = vmatpush1.msra.mxu0 %v745
      %1118 = vmatprep.subr.mxu0 0.0
      %1119 = vmatpush1.msra.mxu0 %v746
      %1120 = vmatprep.subr.mxu0 0.0
      %1121 = vmatpush1.msra.mxu0 %v747
      %1122 = vmatprep.subr.mxu0 0.0
      %1123 = vmatpush1.msra.mxu0 %v748
      %1124 = vmatprep.subr.mxu0 0.0
      %1125 = vmatpush1.msra.mxu0 %v749
      %1126 = vmatprep.subr.mxu0 0.0
      %1127 = vmatpush1.msra.mxu0 %v750
      %1128 = vmatprep.subr.mxu0 0.0
      %1129 = vmatpush1.msra.mxu0 %v751
      %1130 = vmatprep.subr.mxu0 0.0
      %1131 = vmatpush1.msra.mxu0 %v752
      %1132 = vmatprep.subr.mxu0 0.0
      %1133 = vmatpush1.msra.mxu0 %v753
      %1134 = vmatprep.subr.mxu0 0.0
      %1135 = vmatpush1.msra.mxu0 %v754
      %1136 = vmatprep.subr.mxu0 0.0
      %1137 = vmatpush1.msra.mxu0 %v755
      %1138 = vmatprep.subr.mxu0 0.0
      %1139 = vmatpush1.msra.mxu0 %v756
      %1140 = vmatprep.subr.mxu0 0.0
      %1141 = vmatpush1.msra.mxu0 %v757
      %1142 = vmatprep.subr.mxu0 0.0
      %1143 = vmatpush1.msra.mxu0 %v758
      %1144 = vmatprep.subr.mxu0 0.0
      %1145 = vmatpush1.msra.mxu0 %v759
      %1146 = vmatprep.subr.mxu0 0.0
      %1147 = vmatpush1.msra.mxu0 %v760
      %1148 = vmatprep.subr.mxu0 0.0
      %1149 = vmatpush1.msra.mxu0 %v761
      %1150 = vmatprep.subr.mxu0 0.0
      %1151 = vmatpush1.msra.mxu0 %v762
      %1152 = vmatprep.subr.mxu0 0.0
      %1153 = vmatpush1.msra.mxu0 %v763
      %1154 = vmatprep.subr.mxu0 0.0
      %1155 = vmatpush1.msra.mxu0 %v764
      %1156 = vmatprep.subr.mxu0 0.0
      %1157 = vmatpush1.msra.mxu0 %v765
      %1158 = vmatprep.subr.mxu0 0.0
      %1159 = vmatpush1.msra.mxu0 %v766
      %1160 = vmatprep.subr.mxu0 0.0
      %1161 = vmatpush1.msra.mxu0 %v767
      %1162 = vmatprep.subr.mxu0 0.0
      %1163 = vmatpush1.msra.mxu0 %v768
      %1164 = vmatprep.subr.mxu0 0.0
      %1165 = vmatpush1.msra.mxu0 %v769
      %1166 = vmatprep.subr.mxu0 0.0
      %1167 = vmatpush1.msra.mxu0 %v770
      %1168 = vmatprep.subr.mxu0 0.0
      %1169 = vmatpush1.msra.mxu0 %v771
      %1170 = vmatprep.subr.mxu0 0.0
      %1171 = vmatpush1.msra.mxu0 %v772
      %1172 = vmatprep.subr.mxu0 0.0
      %1173 = vmatpush1.msra.mxu0 %v773
      %1174 = vmatprep.subr.mxu0 0.0
      %1175 = vmatpush1.msra.mxu0 %v774
      %1176 = vmatprep.subr.mxu0 0.0
      %1177 = vmatpush1.msra.mxu0 %v775
      %1178 = vmatprep.mubr.f32.mxu0 %v597
      %1179 = vmatmul.mubr.f32.gmra.mrb[0].mxu0 %v540
      %v1180 = vpop.f32.mrb[0].mxu0
      %v1181 = vadd.f32 %v1036, %v1180
      %v1182 = vpop.f32.mrb[0].mxu0
      %1183 = vmatprep.mubr.f32.mxu0 %v599
      %1184 = vmatmul.mubr.f32.gmra.mrb[0].mxu0 %v542
      %v1185 = vpop.f32.mrb[0].mxu0
      %v1186 = vadd.f32 %v1041, %v1185
      %v1187 = vpop.f32.mrb[0].mxu0
      %1188 = vmatprep.mubr.f32.mxu0 %v602
      %1189 = vmatmul.mubr.f32.gmra.mrb[0].mxu0 %v545
      %v1190 = vpop.f32.mrb[0].mxu0
      %v1191 = vadd.f32 %v1046, %v1190
      %v1192 = vpop.f32.mrb[0].mxu0
      %1193 = vmatprep.mubr.f32.mxu0 %v604
      %1194 = vmatmul.mubr.f32.gmra.mrb[0].mxu0 %v547
      %v1195 = vpop.f32.mrb[0].mxu0
      %v1196 = vadd.f32 %v1051, %v1195
      %v1197 = vpop.f32.mrb[0].mxu0
      %1198 = vmatprep.mubr.f32.mxu0 %v607
      %1199 = vmatmul.mubr.f32.gmra.mrb[0].mxu0 %v550
      %v1200 = vpop.f32.mrb[0].mxu0
      %v1201 = vadd.f32 %v1056, %v1200
      %v1202 = vpop.f32.mrb[0].mxu0
      %1203 = vmatprep.mubr.f32.mxu0 %v609
      %1204 = vmatmul.mubr.f32.gmra.mrb[0].mxu0 %v552
      %v1205 = vpop.f32.mrb[0].mxu0
      %v1206 = vadd.f32 %v1061, %v1205
      %v1207 = vpop.f32.mrb[0].mxu0
      %1208 = vmatprep.mubr.f32.mxu0 %v612
      %1209 = vmatmul.mubr.f32.gmra.mrb[0].mxu0 %v555
      %v1210 = vpop.f32.mrb[0].mxu0
      %v1211 = vadd.f32 %v1066, %v1210
      %v1212 = vpop.f32.mrb[0].mxu0
      %1213 = vmatprep.mubr.f32.mxu0 %v614
      %1214 = vmatmul.mubr.f32.gmra.mrb[0].mxu0 %v557
      %v1215 = vpop.f32.mrb[0].mxu0
      %v1216 = vadd.f32 %v1071, %v1215
      %v1217 = vpop.f32.mrb[0].mxu0
      %1218 = vmatprep.mubr.f32.mxu0 %v617
      %1219 = vmatmul.mubr.f32.gmra.mrb[0].mxu0 %v560
      %v1220 = vpop.f32.mrb[0].mxu0
      %v1221 = vadd.f32 %v1076, %v1220
      %v1222 = vpop.f32.mrb[0].mxu0
      %1223 = vmatprep.mubr.f32.mxu0 %v619
      %1224 = vmatmul.mubr.f32.gmra.mrb[0].mxu0 %v562
      %v1225 = vpop.f32.mrb[0].mxu0
      %v1226 = vadd.f32 %v1081, %v1225
      %v1227 = vpop.f32.mrb[0].mxu0
      %1228 = vmatprep.mubr.f32.mxu0 %v622
      %1229 = vmatmul.mubr.f32.gmra.mrb[0].mxu0 %v565
      %v1230 = vpop.f32.mrb[0].mxu0
      %v1231 = vadd.f32 %v1086, %v1230
      %v1232 = vpop.f32.mrb[0].mxu0
      %1233 = vmatprep.mubr.f32.mxu0 %v624
      %1234 = vmatmul.mubr.f32.gmra.mrb[0].mxu0 %v567
      %v1235 = vpop.f32.mrb[0].mxu0
      %v1236 = vadd.f32 %v1091, %v1235
      %v1237 = vpop.f32.mrb[0].mxu0
      %1238 = vmatprep.mubr.f32.mxu0 %v627
      %1239 = vmatmul.mubr.f32.gmra.mrb[0].mxu0 %v570
      %v1240 = vpop.f32.mrb[0].mxu0
      %v1241 = vadd.f32 %v1096, %v1240
      %v1242 = vpop.f32.mrb[0].mxu0
      %1243 = vmatprep.mubr.f32.mxu0 %v629
      %1244 = vmatmul.mubr.f32.gmra.mrb[0].mxu0 %v572
      %v1245 = vpop.f32.mrb[0].mxu0
      %v1246 = vadd.f32 %v1101, %v1245
      %v1247 = vpop.f32.mrb[0].mxu0
      %1248 = vmatprep.mubr.f32.mxu0 %v658
      %1249 = vmatmul.mubr.f32.gmra.mrb[0].mxu0 %v651
      %v1250 = vpop.f32.mrb[0].mxu0
      %v1251 = vadd.f32 %v1106, %v1250
      %v1252 = vpop.f32.mrb[0].mxu0
      %1253 = vmatprep.mubr.f32.mxu0 %v660
      %1254 = vmatmul.mubr.f32.gmra.mrb[0].mxu0 %v653
      %v1255 = vpop.f32.mrb[0].mxu0
      %v1256 = vadd.f32 %v1111, %v1255
      %v1257 = vpop.f32.mrb[0].mxu0
      %1258 = vdwg.mxu0
      %1259 = vmatprep.subr.mxu0 0.0
      %1260 = vmatpush1.msra.mxu0 %v776
      %1261 = vmatprep.subr.mxu0 0.0
      %1262 = vmatpush1.msra.mxu0 %v777
      %1263 = vmatprep.subr.mxu0 0.0
      %1264 = vmatpush1.msra.mxu0 %v778
      %1265 = vmatprep.subr.mxu0 0.0
      %1266 = vmatpush1.msra.mxu0 %v779
      %1267 = vmatprep.subr.mxu0 0.0
      %1268 = vmatpush1.msra.mxu0 %v780
      %1269 = vmatprep.subr.mxu0 0.0
      %1270 = vmatpush1.msra.mxu0 %v781
      %1271 = vmatprep.subr.mxu0 0.0
      %1272 = vmatpush1.msra.mxu0 %v782
      %1273 = vmatprep.subr.mxu0 0.0
      %1274 = vmatpush1.msra.mxu0 %v783
      %1275 = vmatprep.subr.mxu0 0.0
      %1276 = vmatpush1.msra.mxu0 %v784
      %1277 = vmatprep.subr.mxu0 0.0
      %1278 = vmatpush1.msra.mxu0 %v785
      %1279 = vmatprep.subr.mxu0 0.0
      %1280 = vmatpush1.msra.mxu0 %v786
      %1281 = vmatprep.subr.mxu0 0.0
      %1282 = vmatpush1.msra.mxu0 %v787
      %1283 = vmatprep.subr.mxu0 0.0
      %1284 = vmatpush1.msra.mxu0 %v788
      %1285 = vmatprep.subr.mxu0 0.0
      %1286 = vmatpush1.msra.mxu0 %v789
      %1287 = vmatprep.subr.mxu0 0.0
      %1288 = vmatpush1.msra.mxu0 %v790
      %1289 = vmatprep.subr.mxu0 0.0
      %1290 = vmatpush1.msra.mxu0 %v791
      %1291 = vmatprep.subr.mxu0 0.0
      %1292 = vmatpush1.msra.mxu0 %v792
      %1293 = vmatprep.subr.mxu0 0.0
      %1294 = vmatpush1.msra.mxu0 %v793
      %1295 = vmatprep.subr.mxu0 0.0
      %1296 = vmatpush1.msra.mxu0 %v794
      %1297 = vmatprep.subr.mxu0 0.0
      %1298 = vmatpush1.msra.mxu0 %v795
      %1299 = vmatprep.subr.mxu0 0.0
      %1300 = vmatpush1.msra.mxu0 %v796
      %1301 = vmatprep.subr.mxu0 0.0
      %1302 = vmatpush1.msra.mxu0 %v797
      %1303 = vmatprep.subr.mxu0 0.0
      %1304 = vmatpush1.msra.mxu0 %v798
      %1305 = vmatprep.subr.mxu0 0.0
      %1306 = vmatpush1.msra.mxu0 %v799
      %1307 = vmatprep.subr.mxu0 0.0
      %1308 = vmatpush1.msra.mxu0 %v800
      %1309 = vmatprep.subr.mxu0 0.0
      %1310 = vmatpush1.msra.mxu0 %v801
      %1311 = vmatprep.subr.mxu0 0.0
      %1312 = vmatpush1.msra.mxu0 %v802
      %1313 = vmatprep.subr.mxu0 0.0
      %1314 = vmatpush1.msra.mxu0 %v803
      %1315 = vmatprep.subr.mxu0 0.0
      %1316 = vmatpush1.msra.mxu0 %v804
      %1317 = vmatprep.subr.mxu0 0.0
      %1318 = vmatpush1.msra.mxu0 %v805
      %1319 = vmatprep.subr.mxu0 0.0
      %1320 = vmatpush1.msra.mxu0 %v806
      %1321 = vmatprep.subr.mxu0 0.0
      %1322 = vmatpush1.msra.mxu0 %v807
      %1323 = vmatprep.mubr.f32.mxu0 %v545
      %1324 = vmatmul.mubr.f32.gmra.mrb[0].mxu0 %v484
      %v1325 = vpop.f32.mrb[0].mxu0
      %v1326 = vadd.f32 %v1181, %v1325
      %v1327 = vpop.f32.mrb[0].mxu0
      %1328 = vmatprep.mubr.f32.mxu0 %v547
      %1329 = vmatmul.mubr.f32.gmra.mrb[0].mxu0 %v485
      %v1330 = vpop.f32.mrb[0].mxu0
      %v1331 = vadd.f32 %v1186, %v1330
      %v1332 = vpop.f32.mrb[0].mxu0
      %1333 = vmatprep.mubr.f32.mxu0 %v550
      %1334 = vmatmul.mubr.f32.gmra.mrb[0].mxu0 %v487
      %v1335 = vpop.f32.mrb[0].mxu0
      %v1336 = vadd.f32 %v1191, %v1335
      %v1337 = vpop.f32.mrb[0].mxu0
      %1338 = vmatprep.mubr.f32.mxu0 %v552
      %1339 = vmatmul.mubr.f32.gmra.mrb[0].mxu0 %v488
      %v1340 = vpop.f32.mrb[0].mxu0
      %v1341 = vadd.f32 %v1196, %v1340
      %v1342 = vpop.f32.mrb[0].mxu0
      %1343 = vmatprep.mubr.f32.mxu0 %v555
      %1344 = vmatmul.mubr.f32.gmra.mrb[0].mxu0 %v490
      %v1345 = vpop.f32.mrb[0].mxu0
      %v1346 = vadd.f32 %v1201, %v1345
      %v1347 = vpop.f32.mrb[0].mxu0
      %1348 = vmatprep.mubr.f32.mxu0 %v557
      %1349 = vmatmul.mubr.f32.gmra.mrb[0].mxu0 %v491
      %v1350 = vpop.f32.mrb[0].mxu0
      %v1351 = vadd.f32 %v1206, %v1350
      %v1352 = vpop.f32.mrb[0].mxu0
      %1353 = vmatprep.mubr.f32.mxu0 %v560
      %1354 = vmatmul.mubr.f32.gmra.mrb[0].mxu0 %v493
      %v1355 = vpop.f32.mrb[0].mxu0
      %v1356 = vadd.f32 %v1211, %v1355
      %v1357 = vpop.f32.mrb[0].mxu0
      %1358 = vmatprep.mubr.f32.mxu0 %v562
      %1359 = vmatmul.mubr.f32.gmra.mrb[0].mxu0 %v494
      %v1360 = vpop.f32.mrb[0].mxu0
      %v1361 = vadd.f32 %v1216, %v1360
      %v1362 = vpop.f32.mrb[0].mxu0
      %1363 = vmatprep.mubr.f32.mxu0 %v565
      %1364 = vmatmul.mubr.f32.gmra.mrb[0].mxu0 %v496
      %v1365 = vpop.f32.mrb[0].mxu0
      %v1366 = vadd.f32 %v1221, %v1365
      %v1367 = vpop.f32.mrb[0].mxu0
      %1368 = vmatprep.mubr.f32.mxu0 %v567
      %1369 = vmatmul.mubr.f32.gmra.mrb[0].mxu0 %v497
      %v1370 = vpop.f32.mrb[0].mxu0
      %v1371 = vadd.f32 %v1226, %v1370
      %v1372 = vpop.f32.mrb[0].mxu0
      %1373 = vmatprep.mubr.f32.mxu0 %v570
      %1374 = vmatmul.mubr.f32.gmra.mrb[0].mxu0 %v499
      %v1375 = vpop.f32.mrb[0].mxu0
      %v1376 = vadd.f32 %v1231, %v1375
      %v1377 = vpop.f32.mrb[0].mxu0
      %1378 = vmatprep.mubr.f32.mxu0 %v572
      %1379 = vmatmul.mubr.f32.gmra.mrb[0].mxu0 %v500
      %v1380 = vpop.f32.mrb[0].mxu0
      %v1381 = vadd.f32 %v1236, %v1380
      %v1382 = vpop.f32.mrb[0].mxu0
      %1383 = vmatprep.mubr.f32.mxu0 %v651
      %1384 = vmatmul.mubr.f32.gmra.mrb[0].mxu0 %v502
      %v1385 = vpop.f32.mrb[0].mxu0
      %v1386 = vadd.f32 %v1241, %v1385
      %v1387 = vpop.f32.mrb[0].mxu0
      %1388 = vmatprep.mubr.f32.mxu0 %v653
      %1389 = vmatmul.mubr.f32.gmra.mrb[0].mxu0 %v503
      %v1390 = vpop.f32.mrb[0].mxu0
      %v1391 = vadd.f32 %v1246, %v1390
      %v1392 = vpop.f32.mrb[0].mxu0
      %1393 = vmatprep.mubr.f32.mxu0 %v668
      %1394 = vmatmul.mubr.f32.gmra.mrb[0].mxu0 %v505
      %v1395 = vpop.f32.mrb[0].mxu0
      %v1396 = vadd.f32 %v1251, %v1395
      %v1397 = vpop.f32.mrb[0].mxu0
      %1398 = vmatprep.mubr.f32.mxu0 %v670
      %1399 = vmatmul.mubr.f32.gmra.mrb[0].mxu0 %v506
      %v1400 = vpop.f32.mrb[0].mxu0
      %v1401 = vadd.f32 %v1256, %v1400
      %v1402 = vpop.f32.mrb[0].mxu0
      %1403 = vdwg.mxu0
      %1404 = vmatprep.subr.mxu0 0.0
      %1405 = vmatpush1.msra.mxu0 %v808
      %1406 = vmatprep.subr.mxu0 0.0
      %1407 = vmatpush1.msra.mxu0 %v809
      %1408 = vmatprep.subr.mxu0 0.0
      %1409 = vmatpush1.msra.mxu0 %v810
      %1410 = vmatprep.subr.mxu0 0.0
      %1411 = vmatpush1.msra.mxu0 %v811
      %1412 = vmatprep.subr.mxu0 0.0
      %1413 = vmatpush1.msra.mxu0 %v812
      %1414 = vmatprep.subr.mxu0 0.0
      %1415 = vmatpush1.msra.mxu0 %v813
      %1416 = vmatprep.subr.mxu0 0.0
      %1417 = vmatpush1.msra.mxu0 %v814
      %1418 = vmatprep.subr.mxu0 0.0
      %1419 = vmatpush1.msra.mxu0 %v815
      %1420 = vmatprep.subr.mxu0 0.0
      %1421 = vmatpush1.msra.mxu0 %v816
      %1422 = vmatprep.subr.mxu0 0.0
      %1423 = vmatpush1.msra.mxu0 %v817
      %1424 = vmatprep.subr.mxu0 0.0
      %1425 = vmatpush1.msra.mxu0 %v818
      %1426 = vmatprep.subr.mxu0 0.0
      %1427 = vmatpush1.msra.mxu0 %v819
      %1428 = vmatprep.subr.mxu0 0.0
      %1429 = vmatpush1.msra.mxu0 %v820
      %1430 = vmatprep.subr.mxu0 0.0
      %1431 = vmatpush1.msra.mxu0 %v821
      %1432 = vmatprep.subr.mxu0 0.0
      %1433 = vmatpush1.msra.mxu0 %v822
      %1434 = vmatprep.subr.mxu0 0.0
      %1435 = vmatpush1.msra.mxu0 %v823
      %1436 = vmatprep.subr.mxu0 0.0
      %1437 = vmatpush1.msra.mxu0 0.0
      %1438 = vmatprep.subr.mxu0 0.0
      %1439 = vmatpush1.msra.mxu0 0.0
      %1440 = vmatprep.subr.mxu0 0.0
      %1441 = vmatpush1.msra.mxu0 0.0
      %1442 = vmatprep.subr.mxu0 0.0
      %1443 = vmatpush1.msra.mxu0 0.0
      %1444 = vmatprep.subr.mxu0 0.0
      %1445 = vmatpush1.msra.mxu0 0.0
      %1446 = vmatprep.subr.mxu0 0.0
      %1447 = vmatpush1.msra.mxu0 0.0
      %1448 = vmatprep.subr.mxu0 0.0
      %1449 = vmatpush1.msra.mxu0 0.0
      %1450 = vmatprep.subr.mxu0 0.0
      %1451 = vmatpush1.msra.mxu0 0.0
      %1452 = vmatprep.subr.mxu0 0.0
      %1453 = vmatpush1.msra.mxu0 0.0
      %1454 = vmatprep.subr.mxu0 0.0
      %1455 = vmatpush1.msra.mxu0 0.0
      %1456 = vmatprep.subr.mxu0 0.0
      %1457 = vmatpush1.msra.mxu0 0.0
      %1458 = vmatprep.subr.mxu0 0.0
      %1459 = vmatpush1.msra.mxu0 0.0
      %1460 = vmatprep.subr.mxu0 0.0
      %1461 = vmatpush1.msra.mxu0 0.0
      %1462 = vmatprep.subr.mxu0 0.0
      %1463 = vmatpush1.msra.mxu0 0.0
      %1464 = vmatprep.subr.mxu0 0.0
      %1465 = vmatpush1.msra.mxu0 0.0
      %1466 = vmatprep.subr.mxu0 0.0
      %1467 = vmatpush1.msra.mxu0 0.0
      %1468 = vmatprep.mubr.f32.mxu0 0.0
      %1469 = vmatmul.mubr.f32.gmra.mrb[0].mxu0 %v602
      %v1470 = vpop.f32.mrb[0].mxu0
      %v1471 = vadd.f32 %v1326, %v1470
      %v1472 = vpop.f32.mrb[0].mxu0
      %1473 = vmatprep.mubr.f32.mxu0 0.0
      %1474 = vmatmul.mubr.f32.gmra.mrb[0].mxu0 %v604
      %v1475 = vpop.f32.mrb[0].mxu0
      %v1476 = vadd.f32 %v1331, %v1475
      %v1477 = vpop.f32.mrb[0].mxu0
      %1478 = vmatprep.mubr.f32.mxu0 0.0
      %1479 = vmatmul.mubr.f32.gmra.mrb[0].mxu0 %v607
      %v1480 = vpop.f32.mrb[0].mxu0
      %v1481 = vadd.f32 %v1336, %v1480
      %v1482 = vpop.f32.mrb[0].mxu0
      %1483 = vmatprep.mubr.f32.mxu0 0.0
      %1484 = vmatmul.mubr.f32.gmra.mrb[0].mxu0 %v609
      %v1485 = vpop.f32.mrb[0].mxu0
      %v1486 = vadd.f32 %v1341, %v1485
      %v1487 = vpop.f32.mrb[0].mxu0
      %1488 = vmatprep.mubr.f32.mxu0 0.0
      %1489 = vmatmul.mubr.f32.gmra.mrb[0].mxu0 %v612
      %v1490 = vpop.f32.mrb[0].mxu0
      %v1491 = vadd.f32 %v1346, %v1490
      %v1492 = vpop.f32.mrb[0].mxu0
      %1493 = vmatprep.mubr.f32.mxu0 0.0
      %1494 = vmatmul.mubr.f32.gmra.mrb[0].mxu0 %v614
      %v1495 = vpop.f32.mrb[0].mxu0
      %v1496 = vadd.f32 %v1351, %v1495
      %v1497 = vpop.f32.mrb[0].mxu0
      %1498 = vmatprep.mubr.f32.mxu0 0.0
      %1499 = vmatmul.mubr.f32.gmra.mrb[0].mxu0 %v617
      %v1500 = vpop.f32.mrb[0].mxu0
      %v1501 = vadd.f32 %v1356, %v1500
      %v1502 = vpop.f32.mrb[0].mxu0
      %1503 = vmatprep.mubr.f32.mxu0 0.0
      %1504 = vmatmul.mubr.f32.gmra.mrb[0].mxu0 %v619
      %v1505 = vpop.f32.mrb[0].mxu0
      %v1506 = vadd.f32 %v1361, %v1505
      %v1507 = vpop.f32.mrb[0].mxu0
      %1508 = vmatprep.mubr.f32.mxu0 0.0
      %1509 = vmatmul.mubr.f32.gmra.mrb[0].mxu0 %v622
      %v1510 = vpop.f32.mrb[0].mxu0
      %v1511 = vadd.f32 %v1366, %v1510
      %v1512 = vpop.f32.mrb[0].mxu0
      %1513 = vmatprep.mubr.f32.mxu0 0.0
      %1514 = vmatmul.mubr.f32.gmra.mrb[0].mxu0 %v624
      %v1515 = vpop.f32.mrb[0].mxu0
      %v1516 = vadd.f32 %v1371, %v1515
      %v1517 = vpop.f32.mrb[0].mxu0
      %1518 = vmatprep.mubr.f32.mxu0 0.0
      %1519 = vmatmul.mubr.f32.gmra.mrb[0].mxu0 %v627
      %v1520 = vpop.f32.mrb[0].mxu0
      %v1521 = vadd.f32 %v1376, %v1520
      %v1522 = vpop.f32.mrb[0].mxu0
      %1523 = vmatprep.mubr.f32.mxu0 0.0
      %1524 = vmatmul.mubr.f32.gmra.mrb[0].mxu0 %v629
      %v1525 = vpop.f32.mrb[0].mxu0
      %v1526 = vadd.f32 %v1381, %v1525
      %v1527 = vpop.f32.mrb[0].mxu0
      %1528 = vmatprep.mubr.f32.mxu0 0.0
      %1529 = vmatmul.mubr.f32.gmra.mrb[0].mxu0 %v658
      %v1530 = vpop.f32.mrb[0].mxu0
      %v1531 = vadd.f32 %v1386, %v1530
      %v1532 = vpop.f32.mrb[0].mxu0
      %1533 = vmatprep.mubr.f32.mxu0 0.0
      %1534 = vmatmul.mubr.f32.gmra.mrb[0].mxu0 %v660
      %v1535 = vpop.f32.mrb[0].mxu0
      %v1536 = vadd.f32 %v1391, %v1535
      %v1537 = vpop.f32.mrb[0].mxu0
      %1538 = vmatprep.mubr.f32.mxu0 0.0
      %1539 = vmatmul.mubr.f32.gmra.mrb[0].mxu0 %v675
      %v1540 = vpop.f32.mrb[0].mxu0
      %v1541 = vadd.f32 %v1396, %v1540
      %v1542 = vpop.f32.mrb[0].mxu0
      %1543 = vmatprep.mubr.f32.mxu0 0.0
      %1544 = vmatmul.mubr.f32.gmra.mrb[0].mxu0 %v677
      %v1545 = vpop.f32.mrb[0].mxu0
      %v1546 = vadd.f32 %v1401, %v1545
      %v1547 = vpop.f32.mrb[0].mxu0
      %1548 = vdwg.mxu0
      %1549 = vst [vmem:[%s186] sm:$0xff] %v1471
      %1550 = vst [vmem:[%s186 + $0x8] sm:$0xff] %v1476
      %1551 = vst [vmem:[%s186 + $0x10] sm:$0xff] %v1481
      %1552 = vst [vmem:[%s186 + $0x18] sm:$0xff] %v1486
      %1553 = vst [vmem:[%s186 + $0x20] sm:$0xff] %v1491
      %1554 = vst [vmem:[%s186 + $0x28] sm:$0xff] %v1496
      %1555 = vst [vmem:[%s186 + $0x30] sm:$0xff] %v1501
      %1556 = vst [vmem:[%s186 + $0x38] sm:$0xff] %v1506
      %1557 = vst [vmem:[%s186 + $0x40] sm:$0xff] %v1511
      %1558 = vst [vmem:[%s186 + $0x48] sm:$0xff] %v1516
      %1559 = vst [vmem:[%s186 + $0x50] sm:$0xff] %v1521
      %1560 = vst [vmem:[%s186 + $0x58] sm:$0xff] %v1526
      %1561 = vst [vmem:[%s186 + $0x60] sm:$0xff] %v1531
      %1562 = vst [vmem:[%s186 + $0x68] sm:$0xff] %v1536
      %1563 = vst [vmem:[%s186 + $0x70] sm:$0xff] %v1541
      %1564 = vst [vmem:[%s186 + $0x78] sm:$0xff] %v1546
      // Predicated region
      $region107: #{conv_bn_relu.2} parent=23 // pred_check
        %p1565 = pneg %p195
      $region108: #{conv_bn_relu.2} parent=23 // pred_check_branch
        %1567 = sbr.rel (%p1565) target = $region110
      $region109: #{conv_bn_relu.2} parent=23 // pred_region
        %1568 = vst [vmem:[%s190] sm:$0x1] 0.0
        %1569 = vst [vmem:[%s193] sm:$0x1] 0.0
      $region110: #{conv_bn_relu.2} parent=23 // pred_fallthru
        _
      %v1570 = vld [vmem:[%s190] sm:$0x1]
      %v1571 = vadd.f32 %v1471, %v1476
      %v1572 = vadd.f32 %v1571, %v1481
      %v1573 = vadd.f32 %v1572, %v1486
      %v1574 = vadd.f32 %v1573, %v1491
      %v1575 = vadd.f32 %v1574, %v1496
      %v1576 = vadd.f32 %v1575, %v1501
      %v1577 = vadd.f32 %v1576, %v1506
      %v1578 = vadd.f32 %v1577, %v1511
      %v1579 = vadd.f32 %v1578, %v1516
      %v1580 = vadd.f32 %v1579, %v1521
      %v1581 = vadd.f32 %v1580, %v1526
      %v1582 = vadd.f32 %v1581, %v1531
      %v1583 = vadd.f32 %v1582, %v1536
      %v1584 = vadd.f32 %v1583, %v1541
      %v1585 = vadd.f32 %v1584, %v1546
      %v1586 = vrot.slane %v1585, 4
      %v1587 = vadd.f32 %v1585, %v1586
      %v1588 = vrot.slane %v1587, 2
      %v1589 = vadd.f32 %v1587, %v1588
      %v1590 = vrot.slane %v1589, 1
      %v1591 = vadd.f32 %v1589, %v1590
      %v1592 = vadd.f32 %v1570, %v1591
      %1593 = vst [vmem:[%s190] sm:$0x1] %v1592
      %v1594 = vld [vmem:[%s193] sm:$0x1]
      %v1595 = vmul.f32 %v1471, %v1471
      %v1596 = vmul.f32 %v1476, %v1476
      %v1597 = vmul.f32 %v1481, %v1481
      %v1598 = vmul.f32 %v1486, %v1486
      %v1599 = vmul.f32 %v1491, %v1491
      %v1600 = vmul.f32 %v1496, %v1496
      %v1601 = vmul.f32 %v1501, %v1501
      %v1602 = vmul.f32 %v1506, %v1506
      %v1603 = vmul.f32 %v1511, %v1511
      %v1604 = vmul.f32 %v1516, %v1516
      %v1605 = vmul.f32 %v1521, %v1521
      %v1606 = vmul.f32 %v1526, %v1526
      %v1607 = vmul.f32 %v1531, %v1531
      %v1608 = vmul.f32 %v1536, %v1536
      %v1609 = vmul.f32 %v1541, %v1541
      %v1610 = vmul.f32 %v1546, %v1546
      %v1611 = vadd.f32 %v1595, %v1596
      %v1612 = vadd.f32 %v1611, %v1597
      %v1613 = vadd.f32 %v1612, %v1598
      %v1614 = vadd.f32 %v1613, %v1599
      %v1615 = vadd.f32 %v1614, %v1600
      %v1616 = vadd.f32 %v1615, %v1601
      %v1617 = vadd.f32 %v1616, %v1602
      %v1618 = vadd.f32 %v1617, %v1603
      %v1619 = vadd.f32 %v1618, %v1604
      %v1620 = vadd.f32 %v1619, %v1605
      %v1621 = vadd.f32 %v1620, %v1606
      %v1622 = vadd.f32 %v1621, %v1607
      %v1623 = vadd.f32 %v1622, %v1608
      %v1624 = vadd.f32 %v1623, %v1609
      %v1625 = vadd.f32 %v1624, %v1610
      %v1626 = vrot.slane %v1625, 4
      %v1627 = vadd.f32 %v1625, %v1626
      %v1628 = vrot.slane %v1627, 2
      %v1629 = vadd.f32 %v1627, %v1628
      %v1630 = vrot.slane %v1629, 1
      %v1631 = vadd.f32 %v1629, %v1630
      %v1632 = vadd.f32 %v1594, %v1631
      %1633 = vst [vmem:[%s193] sm:$0x1] %v1632
      %s1634 = smul.u32 8, %s21
      %p1635 = scmp.lt.s32.totalorder %s20, 1
      %s1636 = scalar_select %p1635, %s20, 1
      %p1637 = scmp.lt.s32.totalorder %s1634, 15
      %s1638 = scalar_select %p1637, %s1634, 15
      %s1639 = smul.addr %s1638, 2
      %s1640 = smul.addr %s1636, 32
      %s1641 = sadd.s32 %s1639, %s1640
      %s1642 = smul.addr %s1641, 8
      %s1643 = scalar_lea.vmem %s2, %s1642
      %p1644 = scmp.lt.s32.totalorder %s20, 1
      %s1645 = scalar_select %p1644, %s20, 1
      %s1646 = scalar_lea.vmem %s3, %s1645
      %p1647 = scmp.lt.s32.totalorder %s20, 1
      %s1648 = scalar_select %p1647, %s20, 1
      %s1649 = scalar_lea.vmem %s4, %s1648
      // Predicated region
      $region111: #{conv_bn_relu.2} parent=23 // pred_check
        %p1650 = pneg %p69
      $region112: #{conv_bn_relu.2} parent=23 // pred_check_branch
        %1652 = sbr.rel (%p1650) target = $region114
      $region113: #{conv_bn_relu.2} parent=23 // pred_region
        %s1653 = smul.u32 8, %s21
      $region114: #{conv_bn_relu.2} parent=23 // pred_fallthru
        _
      // Predicated region
      $region115: #{conv_bn_relu.2} parent=23 // pred_check
        %p1654 = pneg %p95
      $region116: #{conv_bn_relu.2} parent=23 // pred_check_branch
        %1656 = sbr.rel (%p1654) target = $region118
      $region117: #{conv_bn_relu.2} parent=23 // pred_region
        _
      $region118: #{conv_bn_relu.2} parent=23 // pred_fallthru
        _
      // Predicated region
      $region119: #{conv_bn_relu.2} parent=23 // pred_check
        %p1657 = pneg %p121
      $region120: #{conv_bn_relu.2} parent=23 // pred_check_branch
        %1659 = sbr.rel (%p1657) target = $region122
      $region121: #{conv_bn_relu.2} parent=23 // pred_region
        _
      $region122: #{conv_bn_relu.2} parent=23 // pred_fallthru
        _
    $region24: #{conv_bn_relu.2} parent=5 // pred_fallthru
      _
    %p1660 = scmp.le.s32.totalorder 2, %s11
    // Predicated region
    $region123: #{conv_bn_relu.2} parent=5 // pred_check
      %p1661 = pneg %p1660
    $region124: #{conv_bn_relu.2} parent=5 // pred_check_branch
      %1663 = sbr.rel (%p1661) target = $region126
    $region125: #{conv_bn_relu.2} parent=5 // pred_region
      %s1664 = ssub.s32 %s11, 2
      // Predicated region
      $region127: #{conv_bn_relu.2} parent=125 // pred_check
        %p1665 = pneg %p75
      $region128: #{conv_bn_relu.2} parent=125 // pred_check_branch
        %1667 = sbr.rel (%p1665) target = $region130
      $region129: #{conv_bn_relu.2} parent=125 // pred_region
        %s1668 = smul.u32 8, %s23
        %p1669 = scmp.lt.s32.totalorder %s22, 1
        %s1670 = scalar_select %p1669, %s22, 1
        %p1671 = scmp.lt.s32.totalorder %s1668, 15
        %s1672 = scalar_select %p1671, %s1668, 15
        %s1673 = smul.addr %s1672, 2
        %s1674 = smul.addr %s1670, 32
        %s1675 = sadd.s32 %s1673, %s1674
        %s1676 = smul.addr %s1675, 8
        %s1677 = scalar_lea.vmem %s2, %s1676
      $region130: #{conv_bn_relu.2} parent=125 // pred_fallthru
        _
      // Predicated region
      $region131: #{conv_bn_relu.2} parent=125 // pred_check
        %p1678 = pneg %p101
      $region132: #{conv_bn_relu.2} parent=125 // pred_check_branch
        %1680 = sbr.rel (%p1678) target = $region134
      $region133: #{conv_bn_relu.2} parent=125 // pred_region
        %p1681 = scmp.lt.s32.totalorder %s22, 1
        %s1682 = scalar_select %p1681, %s22, 1
        %s1683 = scalar_lea.vmem %s3, %s1682
      $region134: #{conv_bn_relu.2} parent=125 // pred_fallthru
        _
      // Predicated region
      $region135: #{conv_bn_relu.2} parent=125 // pred_check
        %p1684 = pneg %p127
      $region136: #{conv_bn_relu.2} parent=125 // pred_check_branch
        %1686 = sbr.rel (%p1684) target = $region138
      $region137: #{conv_bn_relu.2} parent=125 // pred_region
        %p1687 = scmp.lt.s32.totalorder %s22, 1
        %s1688 = scalar_select %p1687, %s22, 1
        %s1689 = scalar_lea.vmem %s4, %s1688
      $region138: #{conv_bn_relu.2} parent=125 // pred_fallthru
        _
    $region126: #{conv_bn_relu.2} parent=5 // pred_fallthru
      _
  $region6: #{conv_bn_relu.2} parent=0 // loop_footer
    %s15 = sadd.s32 1, %s11
  $region7: #{conv_bn_relu.2} parent=0 // loop_footer_branch
    %10 = sbr.rel target = $region3
  $region8: #{conv_bn_relu.2} parent=0 // loop_exit
    _
  %1690 = vsyncmov [#allocation3]
  %s1691 = vpop.sfrf %1690
  %p1692 = scmp.eq.s32.totalorder %s1691, 0
  %p1693 = pneg %p1692
  %1695 = shalt.err (%p1693)
  %s1696 = scalar_lea.sflag [#allocation3], 1
  %1697 = vsyncmov %s1696
  %s1698 = vpop.sfrf %1697
  %p1699 = scmp.eq.s32.totalorder %s1698, 0
  %p1700 = pneg %p1699
  %1702 = shalt.err (%p1700)

</llo_original>
